<compile_context>
chip_gen: v6e
topology: v6e:2x2x1
jax: 0.10.0
libtpu: 0.0.40
codegen_flags: <defaults>
</compile_context>

<pallas_src>
import math
import functools

import jax
import jax.numpy as jnp
from jax.experimental import pallas as pl
from jax.experimental.pallas import tpu as pltpu

_INV_SQRT2 = 1.0 / math.sqrt(2.0)
_GELU_TANH_C = math.sqrt(2.0 / math.pi)


# --------------------------------------------------------------------------
# In-kernel math helpers
# --------------------------------------------------------------------------
def _gelu(h, approx):
    if approx:
        # tanh approximation routes the transcendental to the EUP slot
        # (useful when small H makes the VPU the binding VLIW slot).
        return 0.5 * h * (1.0 + jnp.tanh(_GELU_TANH_C * (h + 0.044715 * h * h * h)))
    # exact erf-GELU: matches ACT2FN['gelu'] in the PyTorch module.
    return h * 0.5 * (1.0 + jax.lax.erf(h * _INV_SQRT2))


def _masked_layernorm(y, gamma, beta, eps, h_real):
    """LayerNorm over the first `h_real` lanes of y's last axis.

    Pad lanes are zero on input; gamma/beta are zero on pad lanes so the
    padded output columns stay exactly zero."""
    hp = y.shape[-1]
    inv_h = 1.0 / float(h_real)
    mask = None
    if hp != h_real:
        col = jax.lax.broadcasted_iota(jnp.int32, y.shape, 1)
        mask = (col < h_real).astype(jnp.float32)
        y = y * mask
    mean = jnp.sum(y, axis=-1, keepdims=True) * inv_h
    d = y - mean
    if mask is not None:
        d = d * mask
    var = jnp.sum(d * d, axis=-1, keepdims=True) * inv_h
    return d * jax.lax.rsqrt(var + eps) * gamma + beta


# --------------------------------------------------------------------------
# Kernels
# --------------------------------------------------------------------------
def _ffn_kernel_fused(x_ref, w1_ref, b1_ref, w2_ref, b2_ref, g_ref, bt_ref,
                      o_ref, *, eps, h_real, approx_gelu):
    """Grid = (row_tiles,). Full FFN weights resident in VMEM, single pass."""
    xf = x_ref[...].astype(jnp.float32)                       # [tm, hp]
    cdt = w1_ref.dtype

    h = jnp.dot(xf.astype(cdt), w1_ref[...],
                preferred_element_type=jnp.float32)
    h = h + b1_ref[...].astype(jnp.float32)
    h = _gelu(h, approx_gelu)

    y = jnp.dot(h.astype(cdt), w2_ref[...],
                preferred_element_type=jnp.float32)
    # dropout: identity in eval mode
    y = y + b2_ref[...].astype(jnp.float32) + xf

    o = _masked_layernorm(y, g_ref[...].astype(jnp.float32),
                          bt_ref[...].astype(jnp.float32), eps, h_real)
    o_ref[...] = o.astype(o_ref.dtype)


def _ffn_kernel_tiled(x_ref, w1_ref, b1_ref, w2_ref, b2_ref, g_ref, bt_ref,
                      o_ref, acc_ref, xq_ref, *, eps, h_real, approx_gelu):
    """Grid = (row_tiles, f_tiles). F is the trailing reduction axis."""
    j = pl.program_id(1)
    nj = pl.num_programs(1)
    cdt = w1_ref.dtype

    @pl.when(j == 0)
    def _cache_x():
        # hoist the x -> compute-dtype cast out of the F loop
        xq_ref[...] = x_ref[...].astype(cdt)

    h = jnp.dot(xq_ref[...], w1_ref[...], preferred_element_type=jnp.float32)
    h = h + b1_ref[...].astype(jnp.float32)
    h = _gelu(h, approx_gelu)
    part = jnp.dot(h.astype(cdt), w2_ref[...],
                   preferred_element_type=jnp.float32)

    @pl.when(j == 0)
    def _first():
        acc_ref[...] = part          # no zero-init store + reload

    @pl.when(j > 0)
    def _rest():
        acc_ref[...] += part

    @pl.when(j == nj - 1)
    def _finalize():
        xf = x_ref[...].astype(jnp.float32)
        # dropout: identity in eval mode
        y = acc_ref[...] + b2_ref[...].astype(jnp.float32) + xf
        o = _masked_layernorm(y, g_ref[...].astype(jnp.float32),
                              bt_ref[...].astype(jnp.float32), eps, h_real)
        o_ref[...] = o.astype(o_ref.dtype)


# --------------------------------------------------------------------------
# Wrapper helpers
# --------------------------------------------------------------------------
def _round_up(a, m):
    return (a + m - 1) // m * m


def _cdiv(a, b):
    return (a + b - 1) // b


def _device_profile():
    """Per-TensorCore VMEM budget + rough generation flags."""
    kind = ""
    try:
        kind = jax.devices()[0].device_kind.lower()
    except Exception:
        pass
    try:
        vmem_cap = int(pltpu.get_tpu_info().vmem_capacity_bytes)
    except Exception:
        vmem_cap = 64 << 20
    vmem_cap = max(min(vmem_cap, 128 << 20), 16 << 20)
    is_v7 = "v7" in kind
    is_v5e = ("v5e" in kind) or ("v5 lite" in kind) or ("v5lite" in kind)
    # v7x has 64 MiB per TensorCore; get_tpu_info may report a chip-wide
    # figure, so clamp explicitly (per review feedback).
    per_core_vmem = min(vmem_cap, 64 << 20) if is_v7 else vmem_cap
    return per_core_vmem, is_v7, is_v5e


def _choose_ffn_tile(hp, fp, wbytes, budget, align):
    """Largest F tile (divisor of fp, multiple of `align`, or fp itself) whose
    double-buffered W1+W2 slices fit under `budget` bytes."""
    if fp % align != 0:
        return fp
    candidates = [fp]
    t = fp
    while t % 2 == 0 and (t // 2) >= align and (t // 2) % align == 0:
        t //= 2
        candidates.append(t)
    for tf in candidates:
        if 2 * (2 * hp * tf * wbytes) <= budget:
            return tf
    return candidates[-1]


def _tile_footprint(tm, tf, hp, fp, wbytes):
    return (2 * (2 * hp * tf * wbytes)      # W1 + W2 tiles (double-buffered worst case)
            + 2 * 2 * tm * hp * 4           # x + out tiles (double-buffered)
            + tm * hp * (4 + wbytes)        # f32 accumulator + cached compute-dtype x
            + 3 * tm * tf * 4               # GELU / matmul f32 temporaries
            + 4 * (fp + 3 * hp) * 4)        # biases / LN params


# --------------------------------------------------------------------------
# Public entry point
# --------------------------------------------------------------------------
def intermediate_forward(x, w1, b1, w2, b2, gamma, beta, *, eps=1e-12,
                         row_tile=None, ffn_tile=None, approx_gelu=False):
    """Forward pass of the `Intermediate` block (dropout = identity / eval).

    x: [N, H] f32.  w1: [H, F], w2: [F, H] (transposed vs. torch Linear weight).
    Weights may be bf16 (recommended: native bf16 x bf16 -> f32 MXU path).
    Returns [N, H] in x.dtype.
    """
    n, hdim = x.shape
    fdim = w1.shape[1]
    assert w1.shape == (hdim, fdim) and w2.shape == (fdim, hdim)

    per_core_vmem, _is_v7, is_v5e = _device_profile()
    wdt = w1.dtype
    wbytes = jnp.dtype(wdt).itemsize

    # --- lane padding: make the model axis lane-dense (>=128, multiple of 128).
    hp = max(_round_up(hdim, 128), 128)
    fp = max(_round_up(fdim, 128), 128)

    # --- F (intermediate dim) tiling: full weights resident when they fit the
    #     per-core VMEM budget; otherwise tile F as a reduction axis.
    mxu_align = 128 if is_v5e else 256          # v5e MXU 4x128^2; v6e/v7x 2x256^2
    tile_align = mxu_align if fp % mxu_align == 0 else 128
    weight_budget = int(per_core_vmem * 0.55)
    tf = (_choose_ffn_tile(hp, fp, wbytes, weight_budget, tile_align)
          if ffn_tile is None else ffn_tile)
    assert fp % tf == 0 and (tf == fp or tf % 128 == 0), \
        "F tile must divide padded F and be lane-aligned (x128)"
    f_tiled = tf < fp

    # --- row tiling: large M tiles fill the MXU; when F is tiled the weights
    #     are re-streamed from HBM per row tile, so go big on v6e/v7x.
    if row_tile is None:
        row_tile = (512 if is_v5e else 1024) if f_tiled else 256
    tm = _round_up(min(row_tile, _round_up(n, 8)), 8)
    # shrink if the tile footprint would overflow per-core VMEM
    while tm > 64 and _tile_footprint(tm, tf, hp, fp, wbytes) * 1.25 > per_core_vmem:
        tm = max(64, _round_up(tm // 2, 8))
    # guarantee >= 2 row tiles so both v7x TensorCores get work
    while tm > 8 and _cdiv(n, tm) < 2:
        tm = max(8, _round_up(tm // 2, 8))
    n_pad = _cdiv(n, tm) * tm

    # --- zero-pad operands (zero rows/cols keep all dot contributions exact;
    #     zero gamma/beta on pad lanes keep padded output columns at 0).
    x_in = jnp.pad(x, ((0, n_pad - n), (0, hp - hdim)))
    w1p = jnp.pad(w1, ((0, hp - hdim), (0, fp - fdim)))
    w2p = jnp.pad(w2, ((0, fp - fdim), (0, hp - hdim)))
    b1p = jnp.pad(b1.astype(jnp.float32), (0, fp - fdim)).reshape(1, fp)
    b2p = jnp.pad(b2.astype(jnp.float32), (0, hp - hdim)).reshape(1, hp)
    gp = jnp.pad(gamma.astype(jnp.float32), (0, hp - hdim)).reshape(1, hp)
    bp = jnp.pad(beta.astype(jnp.float32), (0, hp - hdim)).reshape(1, hp)

    est = _tile_footprint(tm, tf, hp, fp, wbytes)
    vmem_limit = int(min(max(int(est * 1.5), 16 << 20),
                         per_core_vmem - (4 << 20)))

    def build(single_buffer_consts):
        def cspec(shape, index_map):
            # constant-index block: fetched once -> single buffer is enough
            if single_buffer_consts:
                return pl.BlockSpec(shape, index_map, pipeline_mode=pl.Buffered(1))
            return pl.BlockSpec(shape, index_map)

        if not f_tiled:
            grid = (n_pad // tm,)
            kernel = functools.partial(_ffn_kernel_fused, eps=eps,
                                       h_real=hdim, approx_gelu=approx_gelu)
            in_specs = [
                pl.BlockSpec((tm, hp), lambda i: (i, 0)),     # x row tile
                cspec((hp, fp), lambda i: (0, 0)),            # W1 (resident)
                cspec((1, fp), lambda i: (0, 0)),             # b1
                cspec((fp, hp), lambda i: (0, 0)),            # W2 (resident)
                cspec((1, hp), lambda i: (0, 0)),             # b2
                cspec((1, hp), lambda i: (0, 0)),             # gamma
                cspec((1, hp), lambda i: (0, 0)),             # beta
            ]
            out_specs = pl.BlockSpec((tm, hp), lambda i: (i, 0))
            scratch = []
            dims = ("parallel",)
        else:
            grid = (n_pad // tm, fp // tf)
            kernel = functools.partial(_ffn_kernel_tiled, eps=eps,
                                       h_real=hdim, approx_gelu=approx_gelu)
            in_specs = [
                pl.BlockSpec((tm, hp), lambda i, j: (i, 0)),  # x row tile
                pl.BlockSpec((hp, tf), lambda i, j: (0, j)),  # W1 F-slice
                pl.BlockSpec((1, tf), lambda i, j: (0, j)),   # b1 F-slice
                pl.BlockSpec((tf, hp), lambda i, j: (j, 0)),  # W2 F-slice
                cspec((1, hp), lambda i, j: (0, 0)),          # b2
                cspec((1, hp), lambda i, j: (0, 0)),          # gamma
                cspec((1, hp), lambda i, j: (0, 0)),          # beta
            ]
            out_specs = pl.BlockSpec((tm, hp), lambda i, j: (i, 0))
            scratch = [pltpu.VMEM((tm, hp), jnp.float32),     # f32 accumulator
                       pltpu.VMEM((tm, hp), wdt)]             # cached compute-dtype x
            dims = ("parallel", "arbitrary")

        return pl.pallas_call(
            kernel,
            out_shape=jax.ShapeDtypeStruct((n_pad, hp), x.dtype),
            grid_spec=pltpu.PrefetchScalarGridSpec(
                num_scalar_prefetch=0,
                grid=grid,
                in_specs=in_specs,
                out_specs=out_specs,
                scratch_shapes=scratch,
            ),
            compiler_params=pltpu.CompilerParams(
                dimension_semantics=dims,
                vmem_limit_bytes=vmem_limit,
            ),
        )

    args = (x_in, w1p, b1p, w2p, b2p, gp, bp)
    try:
        out = build(True)(*args)        # single-buffer constant-index blocks
    except Exception:
        # Fallback: some JAX versions may reject Buffered(1); rebuild with
        # default double-buffering so the kernel always compiles/runs.
        out = build(False)(*args)

    # NOTE: padded rows/columns are valid finite values but meaningless; they
    # are sliced off here and must not be consumed downstream.
    return out[:n, :hdim]


# --------------------------------------------------------------------------
# Pure-JAX reference (same mixed precision as the kernel)
# --------------------------------------------------------------------------
def reference_forward(x, w1, b1, w2, b2, gamma, beta, eps=1e-12,
                      approx_gelu=False):
    xf = x.astype(jnp.float32)
    h = jnp.dot(x.astype(w1.dtype), w1, preferred_element_type=jnp.float32) + b1
    h = _gelu(h, approx_gelu)
    h = jnp.dot(h.astype(w2.dtype), w2, preferred_element_type=jnp.float32) + b2
    y = h + xf
    mean = jnp.mean(y, axis=-1, keepdims=True)
    var = jnp.mean((y - mean) ** 2, axis=-1, keepdims=True)
    return (y - mean) * jax.lax.rsqrt(var + eps) * gamma + beta


# --------------------------------------------------------------------------
# Self-test
# --------------------------------------------------------------------------
if __name__ == "__main__":
    def run_case(batch, seq, hidden, mult, row_tile=None, ffn_tile=None, seed=0):
        ffn = hidden * mult
        key = jax.random.PRNGKey(seed)
        kx, k1, k2, k3, k4 = jax.random.split(key, 5)

        x = jax.random.normal(kx, (batch, seq, hidden), dtype=jnp.float32)
        lim1 = 1.0 / math.sqrt(hidden)
        lim2 = 1.0 / math.sqrt(ffn)
        w1 = jax.random.uniform(k1, (hidden, ffn), jnp.float32, -lim1, lim1)
        b1 = jax.random.uniform(k2, (ffn,), jnp.float32, -lim1, lim1)
        w2 = jax.random.uniform(k3, (ffn, hidden), jnp.float32, -lim2, lim2)
        b2 = jax.random.uniform(k4, (hidden,), jnp.float32, -lim2, lim2)
        gamma = jnp.ones((hidden,), jnp.float32)
        beta = jnp.zeros((hidden,), jnp.float32)

        # bf16 weights -> native bf16 x bf16 -> f32 MXU path (perf feedback)
        w1 = w1.astype(jnp.bfloat16)
        w2 = w2.astype(jnp.bfloat16)

        x2d = x.reshape(batch * seq, hidden)
        out = intermediate_forward(x2d, w1, b1, w2, b2, gamma, beta,
                                   row_tile=row_tile, ffn_tile=ffn_tile)
        out = jax.block_until_ready(out)

        ref = reference_forward(x2d, w1, b1, w2, b2, gamma, beta)
        assert out.shape == ref.shape
        err = jnp.max(jnp.abs(out - ref))
        assert jnp.allclose(out, ref, atol=1e-4, rtol=1e-4), \
            f"mismatch vs reference (max abs err = {err})"

    key = jax.random.PRNGKey(0)  # deterministic seeding (per-case keys above)

    # Primary config from the module args: hidden_size=32, ffn_multiplier=4
    # (H padded to 128 lanes; fused single-pass path).
    run_case(batch=2, seq=8, hidden=32, mult=4)
    # F-tiled accumulator path + ragged row count (F=256, tf=128, N=15).
    run_case(batch=3, seq=5, hidden=32, mult=8, ffn_tile=128, seed=1)
    # Lane-aligned hidden size (no padding / mask), exercises the unmasked LN.
    run_case(batch=2, seq=64, hidden=128, mult=4, seed=2)

    # TODO(synk): training-mode dropout (RNG mask) is not implemented; eval
    # mode (identity) matches the module's inference behavior.
    print("KERNEL_OK")
</pallas_src>

<mosaic_0001>
module attributes {stable_mosaic.version = 11 : i64} {
  func.func @_ffn_kernel_fused(%arg0: i32, %arg1: memref<8x128xf32, #tpu.memory_space<vmem>>, %arg2: memref<128x128xbf16, #tpu.memory_space<vmem>>, %arg3: memref<1x128xf32, #tpu.memory_space<vmem>>, %arg4: memref<128x128xbf16, #tpu.memory_space<vmem>>, %arg5: memref<1x128xf32, #tpu.memory_space<vmem>>, %arg6: memref<1x128xf32, #tpu.memory_space<vmem>>, %arg7: memref<1x128xf32, #tpu.memory_space<vmem>>, %arg8: memref<8x128xf32, #tpu.memory_space<vmem>>) attributes {dimension_semantics = [#tpu.dimension_semantics<parallel>], iteration_bounds = array<i64: 2>, scalar_prefetch = 0 : i64, scratch_operands = 0 : i64, tpu.core_type = #tpu.core_type<tc>, window_params = [{transform_indices = @transform_0, window_bounds = array<i64: 8, 128>}, {pipeline_mode = #tpu.pipeline_mode<synchronous>, transform_indices = @transform_1, window_bounds = array<i64: 128, 128>}, {pipeline_mode = #tpu.pipeline_mode<synchronous>, transform_indices = @transform_2, window_bounds = array<i64: 1, 128>}, {pipeline_mode = #tpu.pipeline_mode<synchronous>, transform_indices = @transform_3, window_bounds = array<i64: 128, 128>}, {pipeline_mode = #tpu.pipeline_mode<synchronous>, transform_indices = @transform_4, window_bounds = array<i64: 1, 128>}, {pipeline_mode = #tpu.pipeline_mode<synchronous>, transform_indices = @transform_5, window_bounds = array<i64: 1, 128>}, {pipeline_mode = #tpu.pipeline_mode<synchronous>, transform_indices = @transform_6, window_bounds = array<i64: 1, 128>}, {transform_indices = @transform_7, window_bounds = array<i64: 8, 128>}]} {
    %c0 = arith.constant 0 : index
    %c0_0 = arith.constant 0 : index
    %0 = vector.load %arg1[%c0, %c0_0] : memref<8x128xf32, #tpu.memory_space<vmem>>, vector<8x128xf32>
    %1 = arith.truncf %0 : vector<8x128xf32> to vector<8x128xbf16>
    %c0_1 = arith.constant 0 : index
    %c0_2 = arith.constant 0 : index
    %2 = vector.load %arg2[%c0_1, %c0_2] : memref<128x128xbf16, #tpu.memory_space<vmem>>, vector<128x128xbf16>
    %cst = arith.constant dense<0.000000e+00> : vector<8x128xf32>
    %3 = tpu.matmul %1, %2, %cst {dimension_numbers = #tpu.dot_dimension_numbers<[1], [0], [0], [1], [0, 0, 1, 1], [], []>} : vector<8x128xbf16>, vector<128x128xbf16>, vector<8x128xf32> -> vector<8x128xf32>
    %c0_3 = arith.constant 0 : index
    %c0_4 = arith.constant 0 : index
    %4 = vector.load %arg3[%c0_3, %c0_4] : memref<1x128xf32, #tpu.memory_space<vmem>>, vector<1x128xf32>
    %5 = vector.broadcast %4 : vector<1x128xf32> to vector<8x128xf32>
    %6 = arith.addf %3, %5 : vector<8x128xf32>
    %cst_5 = arith.constant 5.000000e-01 : f32
    %7 = vector.broadcast %cst_5 : f32 to vector<8x128xf32>
    %8 = arith.mulf %6, %7 : vector<8x128xf32>
    %cst_6 = arith.constant 0.707106769 : f32
    %9 = vector.broadcast %cst_6 : f32 to vector<8x128xf32>
    %10 = arith.mulf %6, %9 : vector<8x128xf32>
    %11 = math.erf %10 : vector<8x128xf32>
    %cst_7 = arith.constant 1.000000e+00 : f32
    %12 = vector.broadcast %cst_7 : f32 to vector<8x128xf32>
    %13 = arith.addf %12, %11 : vector<8x128xf32>
    %14 = arith.mulf %8, %13 : vector<8x128xf32>
    %15 = arith.truncf %14 : vector<8x128xf32> to vector<8x128xbf16>
    %c0_8 = arith.constant 0 : index
    %c0_9 = arith.constant 0 : index
    %16 = vector.load %arg4[%c0_8, %c0_9] : memref<128x128xbf16, #tpu.memory_space<vmem>>, vector<128x128xbf16>
    %cst_10 = arith.constant dense<0.000000e+00> : vector<8x128xf32>
    %17 = tpu.matmul %15, %16, %cst_10 {dimension_numbers = #tpu.dot_dimension_numbers<[1], [0], [0], [1], [0, 0, 1, 1], [], []>} : vector<8x128xbf16>, vector<128x128xbf16>, vector<8x128xf32> -> vector<8x128xf32>
    %c0_11 = arith.constant 0 : index
    %c0_12 = arith.constant 0 : index
    %18 = vector.load %arg5[%c0_11, %c0_12] : memref<1x128xf32, #tpu.memory_space<vmem>>, vector<1x128xf32>
    %19 = vector.broadcast %18 : vector<1x128xf32> to vector<8x128xf32>
    %20 = arith.addf %17, %19 : vector<8x128xf32>
    %21 = arith.addf %20, %0 : vector<8x128xf32>
    %c0_13 = arith.constant 0 : index
    %c0_14 = arith.constant 0 : index
    %22 = vector.load %arg6[%c0_13, %c0_14] : memref<1x128xf32, #tpu.memory_space<vmem>>, vector<1x128xf32>
    %c0_15 = arith.constant 0 : index
    %c0_16 = arith.constant 0 : index
    %23 = vector.load %arg7[%c0_15, %c0_16] : memref<1x128xf32, #tpu.memory_space<vmem>>, vector<1x128xf32>
    %24 = tpu.iota {dimensions = array<i32: 1>} : vector<8x128xi32>
    %c32_i32 = arith.constant 32 : i32
    %25 = vector.broadcast %c32_i32 : i32 to vector<8x128xi32>
    %26 = arith.cmpi slt, %24, %25 : vector<8x128xi32>
    %27 = arith.extui %26 : vector<8x128xi1> to vector<8x128xi32>
    %28 = arith.sitofp %27 : vector<8x128xi32> to vector<8x128xf32>
    %29 = arith.mulf %21, %28 : vector<8x128xf32>
    %cst_17 = arith.constant dense<0.000000e+00> : vector<8xf32>
    %30 = vector.multi_reduction <add>, %29, %cst_17 [1] : vector<8x128xf32> to vector<8xf32>
    %31 = vector.shape_cast %30 : vector<8xf32> to vector<8x1xf32>
    %cst_18 = arith.constant 3.125000e-02 : f32
    %32 = vector.broadcast %cst_18 : f32 to vector<8x1xf32>
    %33 = arith.mulf %31, %32 : vector<8x1xf32>
    %34 = vector.broadcast %33 : vector<8x1xf32> to vector<8x128xf32>
    %35 = arith.subf %29, %34 : vector<8x128xf32>
    %36 = arith.mulf %35, %28 : vector<8x128xf32>
    %37 = arith.mulf %36, %36 : vector<8x128xf32>
    %cst_19 = arith.constant dense<0.000000e+00> : vector<8xf32>
    %38 = vector.multi_reduction <add>, %37, %cst_19 [1] : vector<8x128xf32> to vector<8xf32>
    %39 = vector.shape_cast %38 : vector<8xf32> to vector<8x1xf32>
    %cst_20 = arith.constant 3.125000e-02 : f32
    %40 = vector.broadcast %cst_20 : f32 to vector<8x1xf32>
    %41 = arith.mulf %39, %40 : vector<8x1xf32>
    %cst_21 = arith.constant 9.99999996E-13 : f32
    %42 = vector.broadcast %cst_21 : f32 to vector<8x1xf32>
    %43 = arith.addf %41, %42 : vector<8x1xf32>
    %44 = math.rsqrt %43 : vector<8x1xf32>
    %45 = vector.broadcast %44 : vector<8x1xf32> to vector<8x128xf32>
    %46 = arith.mulf %36, %45 : vector<8x128xf32>
    %47 = vector.broadcast %22 : vector<1x128xf32> to vector<8x128xf32>
    %48 = arith.mulf %46, %47 : vector<8x128xf32>
    %49 = vector.broadcast %23 : vector<1x128xf32> to vector<8x128xf32>
    %50 = arith.addf %48, %49 : vector<8x128xf32>
    %c0_22 = arith.constant 0 : index
    %c0_23 = arith.constant 0 : index
    %51 = vector.load %arg8[%c0_22, %c0_23] : memref<8x128xf32, #tpu.memory_space<vmem>>, vector<8x128xf32>
    tpu.vector_store %arg8[%c0_22, %c0_23], %50 {strides = array<i32>} : memref<8x128xf32, #tpu.memory_space<vmem>>, vector<8x128xf32>,
    return
  }
  func.func @transform_0(%arg0: i32) -> (i32, i32) {
    %c0_i32 = arith.constant 0 : i32
    %c0_i32_0 = arith.constant 0 : i32
    return %arg0, %c0_i32 : i32, i32
  }
  func.func @transform_1(%arg0: i32) -> (i32, i32) {
    %c0_i32 = arith.constant 0 : i32
    %c0_i32_0 = arith.constant 0 : i32
    %c0_i32_1 = arith.constant 0 : i32
    return %c0_i32, %c0_i32_0 : i32, i32
  }
  func.func @transform_2(%arg0: i32) -> (i32, i32) {
    %c0_i32 = arith.constant 0 : i32
    %c0_i32_0 = arith.constant 0 : i32
    %c0_i32_1 = arith.constant 0 : i32
    return %c0_i32, %c0_i32_0 : i32, i32
  }
  func.func @transform_3(%arg0: i32) -> (i32, i32) {
    %c0_i32 = arith.constant 0 : i32
    %c0_i32_0 = arith.constant 0 : i32
    %c0_i32_1 = arith.constant 0 : i32
    return %c0_i32, %c0_i32_0 : i32, i32
  }
  func.func @transform_4(%arg0: i32) -> (i32, i32) {
    %c0_i32 = arith.constant 0 : i32
    %c0_i32_0 = arith.constant 0 : i32
    %c0_i32_1 = arith.constant 0 : i32
    return %c0_i32, %c0_i32_0 : i32, i32
  }
  func.func @transform_5(%arg0: i32) -> (i32, i32) {
    %c0_i32 = arith.constant 0 : i32
    %c0_i32_0 = arith.constant 0 : i32
    %c0_i32_1 = arith.constant 0 : i32
    return %c0_i32, %c0_i32_0 : i32, i32
  }
  func.func @transform_6(%arg0: i32) -> (i32, i32) {
    %c0_i32 = arith.constant 0 : i32
    %c0_i32_0 = arith.constant 0 : i32
    %c0_i32_1 = arith.constant 0 : i32
    return %c0_i32, %c0_i32_0 : i32, i32
  }
  func.func @transform_7(%arg0: i32) -> (i32, i32) {
    %c0_i32 = arith.constant 0 : i32
    %c0_i32_0 = arith.constant 0 : i32
    return %arg0, %c0_i32 : i32, i32
  }
}

module attributes {stable_mosaic.version = 11 : i64} {
  func.func @_ffn_kernel_fused(%arg0: i32, %arg1: memref<8x128xf32, #tpu.memory_space<vmem>>, %arg2: memref<128x128xbf16, #tpu.memory_space<vmem>>, %arg3: memref<1x128xf32, #tpu.memory_space<vmem>>, %arg4: memref<128x128xbf16, #tpu.memory_space<vmem>>, %arg5: memref<1x128xf32, #tpu.memory_space<vmem>>, %arg6: memref<1x128xf32, #tpu.memory_space<vmem>>, %arg7: memref<1x128xf32, #tpu.memory_space<vmem>>, %arg8: memref<8x128xf32, #tpu.memory_space<vmem>>) attributes {dimension_semantics = [#tpu.dimension_semantics<parallel>], iteration_bounds = array<i64: 2>, scalar_prefetch = 0 : i64, scratch_operands = 0 : i64, tpu.core_type = #tpu.core_type<tc>, window_params = [{transform_indices = @transform_0, window_bounds = array<i64: 8, 128>}, {pipeline_mode = #tpu.pipeline_mode<synchronous>, transform_indices = @transform_1, window_bounds = array<i64: 128, 128>}, {pipeline_mode = #tpu.pipeline_mode<synchronous>, transform_indices = @transform_2, window_bounds = array<i64: 1, 128>}, {pipeline_mode = #tpu.pipeline_mode<synchronous>, transform_indices = @transform_3, window_bounds = array<i64: 128, 128>}, {pipeline_mode = #tpu.pipeline_mode<synchronous>, transform_indices = @transform_4, window_bounds = array<i64: 1, 128>}, {pipeline_mode = #tpu.pipeline_mode<synchronous>, transform_indices = @transform_5, window_bounds = array<i64: 1, 128>}, {pipeline_mode = #tpu.pipeline_mode<synchronous>, transform_indices = @transform_6, window_bounds = array<i64: 1, 128>}, {transform_indices = @transform_7, window_bounds = array<i64: 8, 128>}]} {
    %c0 = arith.constant 0 : index
    %c0_0 = arith.constant 0 : index
    %0 = vector.load %arg1[%c0, %c0_0] : memref<8x128xf32, #tpu.memory_space<vmem>>, vector<8x128xf32>
    %1 = arith.truncf %0 : vector<8x128xf32> to vector<8x128xbf16>
    %c0_1 = arith.constant 0 : index
    %c0_2 = arith.constant 0 : index
    %2 = vector.load %arg2[%c0_1, %c0_2] : memref<128x128xbf16, #tpu.memory_space<vmem>>, vector<128x128xbf16>
    %cst = arith.constant dense<0.000000e+00> : vector<8x128xf32>
    %3 = tpu.matmul %1, %2, %cst {dimension_numbers = #tpu.dot_dimension_numbers<[1], [0], [0], [1], [0, 0, 1, 1], [], []>} : vector<8x128xbf16>, vector<128x128xbf16>, vector<8x128xf32> -> vector<8x128xf32>
    %c0_3 = arith.constant 0 : index
    %c0_4 = arith.constant 0 : index
    %4 = vector.load %arg3[%c0_3, %c0_4] : memref<1x128xf32, #tpu.memory_space<vmem>>, vector<1x128xf32>
    %5 = vector.broadcast %4 : vector<1x128xf32> to vector<8x128xf32>
    %6 = arith.addf %3, %5 : vector<8x128xf32>
    %cst_5 = arith.constant 5.000000e-01 : f32
    %7 = vector.broadcast %cst_5 : f32 to vector<8x128xf32>
    %8 = arith.mulf %6, %7 : vector<8x128xf32>
    %cst_6 = arith.constant 0.707106769 : f32
    %9 = vector.broadcast %cst_6 : f32 to vector<8x128xf32>
    %10 = arith.mulf %6, %9 : vector<8x128xf32>
    %11 = math.erf %10 : vector<8x128xf32>
    %cst_7 = arith.constant 1.000000e+00 : f32
    %12 = vector.broadcast %cst_7 : f32 to vector<8x128xf32>
    %13 = arith.addf %12, %11 : vector<8x128xf32>
    %14 = arith.mulf %8, %13 : vector<8x128xf32>
    %15 = arith.truncf %14 : vector<8x128xf32> to vector<8x128xbf16>
    %c0_8 = arith.constant 0 : index
    %c0_9 = arith.constant 0 : index
    %16 = vector.load %arg4[%c0_8, %c0_9] : memref<128x128xbf16, #tpu.memory_space<vmem>>, vector<128x128xbf16>
    %cst_10 = arith.constant dense<0.000000e+00> : vector<8x128xf32>
    %17 = tpu.matmul %15, %16, %cst_10 {dimension_numbers = #tpu.dot_dimension_numbers<[1], [0], [0], [1], [0, 0, 1, 1], [], []>} : vector<8x128xbf16>, vector<128x128xbf16>, vector<8x128xf32> -> vector<8x128xf32>
    %c0_11 = arith.constant 0 : index
    %c0_12 = arith.constant 0 : index
    %18 = vector.load %arg5[%c0_11, %c0_12] : memref<1x128xf32, #tpu.memory_space<vmem>>, vector<1x128xf32>
    %19 = vector.broadcast %18 : vector<1x128xf32> to vector<8x128xf32>
    %20 = arith.addf %17, %19 : vector<8x128xf32>
    %21 = arith.addf %20, %0 : vector<8x128xf32>
    %c0_13 = arith.constant 0 : index
    %c0_14 = arith.constant 0 : index
    %22 = vector.load %arg6[%c0_13, %c0_14] : memref<1x128xf32, #tpu.memory_space<vmem>>, vector<1x128xf32>
    %c0_15 = arith.constant 0 : index
    %c0_16 = arith.constant 0 : index
    %23 = vector.load %arg7[%c0_15, %c0_16] : memref<1x128xf32, #tpu.memory_space<vmem>>, vector<1x128xf32>
    %24 = tpu.iota {dimensions = array<i32: 1>} : vector<8x128xi32>
    %c32_i32 = arith.constant 32 : i32
    %25 = vector.broadcast %c32_i32 : i32 to vector<8x128xi32>
    %26 = arith.cmpi slt, %24, %25 : vector<8x128xi32>
    %27 = arith.extui %26 : vector<8x128xi1> to vector<8x128xi32>
    %28 = arith.sitofp %27 : vector<8x128xi32> to vector<8x128xf32>
    %29 = arith.mulf %21, %28 : vector<8x128xf32>
    %cst_17 = arith.constant dense<0.000000e+00> : vector<8xf32>
    %30 = vector.multi_reduction <add>, %29, %cst_17 [1] : vector<8x128xf32> to vector<8xf32>
    %31 = vector.shape_cast %30 : vector<8xf32> to vector<8x1xf32>
    %cst_18 = arith.constant 3.125000e-02 : f32
    %32 = vector.broadcast %cst_18 : f32 to vector<8x1xf32>
    %33 = arith.mulf %31, %32 : vector<8x1xf32>
    %34 = vector.broadcast %33 : vector<8x1xf32> to vector<8x128xf32>
    %35 = arith.subf %29, %34 : vector<8x128xf32>
    %36 = arith.mulf %35, %28 : vector<8x128xf32>
    %37 = arith.mulf %36, %36 : vector<8x128xf32>
    %cst_19 = arith.constant dense<0.000000e+00> : vector<8xf32>
    %38 = vector.multi_reduction <add>, %37, %cst_19 [1] : vector<8x128xf32> to vector<8xf32>
    %39 = vector.shape_cast %38 : vector<8xf32> to vector<8x1xf32>
    %cst_20 = arith.constant 3.125000e-02 : f32
    %40 = vector.broadcast %cst_20 : f32 to vector<8x1xf32>
    %41 = arith.mulf %39, %40 : vector<8x1xf32>
    %cst_21 = arith.constant 9.99999996E-13 : f32
    %42 = vector.broadcast %cst_21 : f32 to vector<8x1xf32>
    %43 = arith.addf %41, %42 : vector<8x1xf32>
    %44 = math.rsqrt %43 : vector<8x1xf32>
    %45 = vector.broadcast %44 : vector<8x1xf32> to vector<8x128xf32>
    %46 = arith.mulf %36, %45 : vector<8x128xf32>
    %47 = vector.broadcast %22 : vector<1x128xf32> to vector<8x128xf32>
    %48 = arith.mulf %46, %47 : vector<8x128xf32>
    %49 = vector.broadcast %23 : vector<1x128xf32> to vector<8x128xf32>
    %50 = arith.addf %48, %49 : vector<8x128xf32>
    %c0_22 = arith.constant 0 : index
    %c0_23 = arith.constant 0 : index
    %51 = vector.load %arg8[%c0_22, %c0_23] : memref<8x128xf32, #tpu.memory_space<vmem>>, vector<8x128xf32>
    tpu.vector_store %arg8[%c0_22, %c0_23], %50 {strides = array<i32>} : memref<8x128xf32, #tpu.memory_space<vmem>>, vector<8x128xf32>,
    return
  }
  func.func @transform_0(%arg0: i32) -> (i32, i32) {
    %c0_i32 = arith.constant 0 : i32
    %c0_i32_0 = arith.constant 0 : i32
    return %arg0, %c0_i32 : i32, i32
  }
  func.func @transform_1(%arg0: i32) -> (i32, i32) {
    %c0_i32 = arith.constant 0 : i32
    %c0_i32_0 = arith.constant 0 : i32
    %c0_i32_1 = arith.constant 0 : i32
    return %c0_i32, %c0_i32_0 : i32, i32
  }
  func.func @transform_2(%arg0: i32) -> (i32, i32) {
    %c0_i32 = arith.constant 0 : i32
    %c0_i32_0 = arith.constant 0 : i32
    %c0_i32_1 = arith.constant 0 : i32
    return %c0_i32, %c0_i32_0 : i32, i32
  }
  func.func @transform_3(%arg0: i32) -> (i32, i32) {
    %c0_i32 = arith.constant 0 : i32
    %c0_i32_0 = arith.constant 0 : i32
    %c0_i32_1 = arith.constant 0 : i32
    return %c0_i32, %c0_i32_0 : i32, i32
  }
  func.func @transform_4(%arg0: i32) -> (i32, i32) {
    %c0_i32 = arith.constant 0 : i32
    %c0_i32_0 = arith.constant 0 : i32
    %c0_i32_1 = arith.constant 0 : i32
    return %c0_i32, %c0_i32_0 : i32, i32
  }
  func.func @transform_5(%arg0: i32) -> (i32, i32) {
    %c0_i32 = arith.constant 0 : i32
    %c0_i32_0 = arith.constant 0 : i32
    %c0_i32_1 = arith.constant 0 : i32
    return %c0_i32, %c0_i32_0 : i32, i32
  }
  func.func @transform_6(%arg0: i32) -> (i32, i32) {
    %c0_i32 = arith.constant 0 : i32
    %c0_i32_0 = arith.constant 0 : i32
    %c0_i32_1 = arith.constant 0 : i32
    return %c0_i32, %c0_i32_0 : i32, i32
  }
  func.func @transform_7(%arg0: i32) -> (i32, i32) {
    %c0_i32 = arith.constant 0 : i32
    %c0_i32_0 = arith.constant 0 : i32
    return %arg0, %c0_i32 : i32, i32
  }
}

</mosaic_0001>

<llo_original>
// kernel: tpu_custom_call.1
$region0: #{tpu_custom_call.1}
  #allocation0 [shape = 'u32[]', space=smem, size = 0x4, offset = 0x4, fixed_abs, tag = 'smem constant byte address 0x4 - core index']
  #allocation1 [shape = 'u32[144,128]{1,0:T(1,128)}', space=vmem, size = 0x12000, scoped, tag = 'internal scratch']
  %s0 = inlined_call_operand.hbm [shape: f32[16,128], index: 0, kind: input, shape index: {}]
  %s1 = inlined_call_operand.hbm [shape: bf16[128,128], index: 1, kind: input, shape index: {}]
  %s2 = inlined_call_operand.vmem [shape: f32[1,128], index: 2, kind: input, shape index: {}]
  %s3 = inlined_call_operand.hbm [shape: bf16[128,128], index: 3, kind: input, shape index: {}]
  %s4 = inlined_call_operand.vmem [shape: f32[1,128], index: 4, kind: input, shape index: {}]
  %s5 = inlined_call_operand.vmem [shape: f32[1,128], index: 5, kind: input, shape index: {}]
  %s6 = inlined_call_operand.vmem [shape: f32[1,128], index: 6, kind: input, shape index: {}]
  %s7 = inlined_call_operand.hbm [shape: f32[16,128], index: 7, kind: output, shape index: {}]
  %s8 = sld [smem:[#allocation0]]
  $region73: #{tpu_custom_call.1} parent=0
    _
  %s10 = ssub.s32 1, %s8
  %s11 = scalar_select 0, %s10, %s8
  $region1: #{tpu_custom_call.1} parent=0
    #allocation2 [shape = 'u8[8192]{0}', space=vmem, size = 0x2000, scoped, tag = 'input window, operand 0']
    #allocation3 [shape = 's32[2]{0}', space=sflag, size = 0x8, scoped, tag = 'scoped memory for tpu_custom_call.1']
    #allocation4 [shape = 's32[2]{0}', space=sflag, size = 0x8, scoped, tag = 'scoped memory for tpu_custom_call.1']
    #allocation5 [shape = 'u8[32768]{0}', space=vmem, size = 0x8000, scoped, tag = 'input window, operand 1, single buffered']
    #allocation6 [shape = 's32[1]{0}', space=sflag, size = 0x4, scoped, tag = 'scoped memory for tpu_custom_call.1']
    #allocation7 [shape = 'u8[32768]{0}', space=vmem, size = 0x8000, scoped, tag = 'input window, operand 3, single buffered']
    #allocation8 [shape = 'u8[8192]{0}', space=vmem, size = 0x2000, scoped, tag = 'output window, operand 0']
    %12 = vsyncpa [#allocation3], 0
    %s13 = scalar_lea.sflag [#allocation3], 1
    %14 = vsyncpa %s13, 0
    %15 = vsyncpa [#allocation6], 0
    %16 = vsyncpa [#allocation4], 0
    %s17 = scalar_lea.sflag [#allocation4], 1
    %18 = vsyncpa %s17, 0
    loop: start=0, step=1, limit=4
    $region2: #{tpu_custom_call.1} parent=1 // loop_pre_header
      _
    $region3: #{tpu_custom_call.1} parent=1 // loop_header
      %s20 = sphi 0, %s24
      %p21 = scmp.ge.s32.totalorder %s20, 4
      %s30 = sphi 0, %s32
      %s33 = sphi 0, %s30
      %s34 = sphi 0, %s33
      %s50 = sphi 0, %s34
      %s54 = sphi 0, %s54
      %s56 = sphi 0, %s54
      %s57 = sphi 0, %s56
      %s71 = sphi 0, %s57
      %s75 = sphi 0, %s75
      %s77 = sphi 0, %s75
      %s78 = sphi 0, %s77
      %s92 = sphi 0, %s78
      %s96 = sphi 0, %s96
      %s98 = sphi 0, %s96
      %s99 = sphi 0, %s98
      %s113 = sphi 0, %s99
      %s117 = sphi 0, %s117
      %s119 = sphi 0, %s117
      %s120 = sphi 0, %s119
      %s134 = sphi 0, %s120
      %s138 = sphi 0, %s138
      %s140 = sphi 0, %s138
      %s141 = sphi 0, %s140
      %s155 = sphi 0, %s141
      %s159 = sphi 0, %s159
      %s161 = sphi 0, %s159
      %s162 = sphi 0, %s161
      %s176 = sphi 0, %s162
      %s182 = sphi 0, %s184
      %s185 = sphi 0, %s182
      %s186 = sphi 0, %s185
      %s202 = sphi 0, %s186
    $region4: #{tpu_custom_call.1} parent=1 // loop_header_branch
      %23 = sbr.rel (%p21) target = $region8
    $region5: #{tpu_custom_call.1} parent=1 // loop_body
      %s25 = ssub.s32 %s20, 1
      %s26 = ssub.s32 %s20, 2
      %s27 = sadd.s32 %s20, 1
      %s28 = ssub.s32 %s20, %s27
      %p29 = scmp.eq.s32.totalorder %s28, 0
      %s31 = sadd.s32 %s30, 1
      %s32 = scalar_select %p29, %s30, %s31
      %p35 = pneg %p29
      %p36 = scmp.eq.s32.totalorder %s20, 1
      %p37 = por %p35, %p36
      %p38 = scmp.ne.s32.totalorder %s30, %s33
      %p39 = scmp.eq.s32.totalorder %s20, 0
      %p40 = por %p38, %p39
      %p41 = scmp.ne.s32.totalorder %s30, %s33
      %p42 = scmp.eq.s32.totalorder %s25, 1
      %p43 = por %p41, %p42
      %p44 = scmp.ne.s32.totalorder %s33, %s34
      %p45 = scmp.eq.s32.totalorder %s25, 0
      %p46 = por %p44, %p45
      %p47 = scmp.ne.s32.totalorder %s33, %s34
      %p48 = scmp.eq.s32.totalorder %s26, 1
      %p49 = por %p47, %p48
      %p51 = scmp.ne.s32.totalorder %s34, %s50
      %p52 = scmp.eq.s32.totalorder %s26, 0
      %p53 = por %p51, %p52
      %s55 = sadd.s32 %s54, 1
      %p58 = scmp.eq.s32.totalorder %s20, 1
      %p59 = scmp.ne.s32.totalorder %s54, %s56
      %p60 = scmp.eq.s32.totalorder %s20, 0
      %p61 = por %p59, %p60
      %p62 = scmp.ne.s32.totalorder %s54, %s56
      %p63 = scmp.eq.s32.totalorder %s25, 1
      %p64 = por %p62, %p63
      %p65 = scmp.ne.s32.totalorder %s56, %s57
      %p66 = scmp.eq.s32.totalorder %s25, 0
      %p67 = por %p65, %p66
      %p68 = scmp.ne.s32.totalorder %s56, %s57
      %p69 = scmp.eq.s32.totalorder %s26, 1
      %p70 = por %p68, %p69
      %p72 = scmp.ne.s32.totalorder %s57, %s71
      %p73 = scmp.eq.s32.totalorder %s26, 0
      %p74 = por %p72, %p73
      %s76 = sadd.s32 %s75, 1
      %p79 = scmp.eq.s32.totalorder %s20, 1
      %p80 = scmp.ne.s32.totalorder %s75, %s77
      %p81 = scmp.eq.s32.totalorder %s20, 0
      %p82 = por %p80, %p81
      %p83 = scmp.ne.s32.totalorder %s75, %s77
      %p84 = scmp.eq.s32.totalorder %s25, 1
      %p85 = por %p83, %p84
      %p86 = scmp.ne.s32.totalorder %s77, %s78
      %p87 = scmp.eq.s32.totalorder %s25, 0
      %p88 = por %p86, %p87
      %p89 = scmp.ne.s32.totalorder %s77, %s78
      %p90 = scmp.eq.s32.totalorder %s26, 1
      %p91 = por %p89, %p90
      %p93 = scmp.ne.s32.totalorder %s78, %s92
      %p94 = scmp.eq.s32.totalorder %s26, 0
      %p95 = por %p93, %p94
      %s97 = sadd.s32 %s96, 1
      %p100 = scmp.eq.s32.totalorder %s20, 1
      %p101 = scmp.ne.s32.totalorder %s96, %s98
      %p102 = scmp.eq.s32.totalorder %s20, 0
      %p103 = por %p101, %p102
      %p104 = scmp.ne.s32.totalorder %s96, %s98
      %p105 = scmp.eq.s32.totalorder %s25, 1
      %p106 = por %p104, %p105
      %p107 = scmp.ne.s32.totalorder %s98, %s99
      %p108 = scmp.eq.s32.totalorder %s25, 0
      %p109 = por %p107, %p108
      %p110 = scmp.ne.s32.totalorder %s98, %s99
      %p111 = scmp.eq.s32.totalorder %s26, 1
      %p112 = por %p110, %p111
      %p114 = scmp.ne.s32.totalorder %s99, %s113
      %p115 = scmp.eq.s32.totalorder %s26, 0
      %p116 = por %p114, %p115
      %s118 = sadd.s32 %s117, 1
      %p121 = scmp.eq.s32.totalorder %s20, 1
      %p122 = scmp.ne.s32.totalorder %s117, %s119
      %p123 = scmp.eq.s32.totalorder %s20, 0
      %p124 = por %p122, %p123
      %p125 = scmp.ne.s32.totalorder %s117, %s119
      %p126 = scmp.eq.s32.totalorder %s25, 1
      %p127 = por %p125, %p126
      %p128 = scmp.ne.s32.totalorder %s119, %s120
      %p129 = scmp.eq.s32.totalorder %s25, 0
      %p130 = por %p128, %p129
      %p131 = scmp.ne.s32.totalorder %s119, %s120
      %p132 = scmp.eq.s32.totalorder %s26, 1
      %p133 = por %p131, %p132
      %p135 = scmp.ne.s32.totalorder %s120, %s134
      %p136 = scmp.eq.s32.totalorder %s26, 0
      %p137 = por %p135, %p136
      %s139 = sadd.s32 %s138, 1
      %p142 = scmp.eq.s32.totalorder %s20, 1
      %p143 = scmp.ne.s32.totalorder %s138, %s140
      %p144 = scmp.eq.s32.totalorder %s20, 0
      %p145 = por %p143, %p144
      %p146 = scmp.ne.s32.totalorder %s138, %s140
      %p147 = scmp.eq.s32.totalorder %s25, 1
      %p148 = por %p146, %p147
      %p149 = scmp.ne.s32.totalorder %s140, %s141
      %p150 = scmp.eq.s32.totalorder %s25, 0
      %p151 = por %p149, %p150
      %p152 = scmp.ne.s32.totalorder %s140, %s141
      %p153 = scmp.eq.s32.totalorder %s26, 1
      %p154 = por %p152, %p153
      %p156 = scmp.ne.s32.totalorder %s141, %s155
      %p157 = scmp.eq.s32.totalorder %s26, 0
      %p158 = por %p156, %p157
      %s160 = sadd.s32 %s159, 1
      %p163 = scmp.eq.s32.totalorder %s20, 1
      %p164 = scmp.ne.s32.totalorder %s159, %s161
      %p165 = scmp.eq.s32.totalorder %s20, 0
      %p166 = por %p164, %p165
      %p167 = scmp.ne.s32.totalorder %s159, %s161
      %p168 = scmp.eq.s32.totalorder %s25, 1
      %p169 = por %p167, %p168
      %p170 = scmp.ne.s32.totalorder %s161, %s162
      %p171 = scmp.eq.s32.totalorder %s25, 0
      %p172 = por %p170, %p171
      %p173 = scmp.ne.s32.totalorder %s161, %s162
      %p174 = scmp.eq.s32.totalorder %s26, 1
      %p175 = por %p173, %p174
      %p177 = scmp.ne.s32.totalorder %s162, %s176
      %p178 = scmp.eq.s32.totalorder %s26, 0
      %p179 = por %p177, %p178
      %s180 = ssub.s32 %s20, %s27
      %p181 = scmp.eq.s32.totalorder %s180, 0
      %s183 = sadd.s32 %s182, 1
      %s184 = scalar_select %p181, %s182, %s183
      %p187 = pneg %p181
      %p188 = scmp.eq.s32.totalorder %s20, 1
      %p189 = por %p187, %p188
      %p190 = scmp.ne.s32.totalorder %s182, %s185
      %p191 = scmp.eq.s32.totalorder %s20, 0
      %p192 = por %p190, %p191
      %p193 = scmp.ne.s32.totalorder %s182, %s185
      %p194 = scmp.eq.s32.totalorder %s25, 1
      %p195 = por %p193, %p194
      %p196 = scmp.ne.s32.totalorder %s185, %s186
      %p197 = scmp.eq.s32.totalorder %s25, 0
      %p198 = por %p196, %p197
      %p199 = scmp.ne.s32.totalorder %s185, %s186
      %p200 = scmp.eq.s32.totalorder %s26, 1
      %p201 = por %p199, %p200
      %p203 = scmp.ne.s32.totalorder %s186, %s202
      %p204 = scmp.eq.s32.totalorder %s26, 0
      %p205 = por %p203, %p204
      %p206 = scmp.le.s32.totalorder 1, %s20
      %p207 = scmp.lt.s32.totalorder %s20, 3
      %p208 = pnand %p206, %p207
      %p209 = pneg %p208
      // Predicated region
      $region9: #{tpu_custom_call.1} parent=5 // pred_check
        _
      $region10: #{tpu_custom_call.1} parent=5 // pred_check_branch
        %211 = sbr.rel (%p208) target = $region12
      $region11: #{tpu_custom_call.1} parent=5 // pred_region
        %s212 = ssub.s32 %s20, 1
        // Predicated region
        $region13: #{tpu_custom_call.1} parent=11 // pred_check
          %p213 = pneg %p67
        $region14: #{tpu_custom_call.1} parent=11 // pred_check_branch
          %215 = sbr.rel (%p213) target = $region16
        $region15: #{tpu_custom_call.1} parent=11 // pred_region
          %s217 = ssub.s32 1024, 1024
          %218 = vsyncadd [#allocation6], %s217
          %s219 = sshll.u32 [#allocation5], 4
          %s220 = int_to_ptr.vmem [resolvable:$true] %s219
          %225 = dma.hbm_to_vmem [thread:$0]  %s1, 1024, %s220, [#allocation6], 64, 64, 4
        $region16: #{tpu_custom_call.1} parent=11 // pred_fallthru
          _
        // Predicated region
        $region17: #{tpu_custom_call.1} parent=11 // pred_check
          %p226 = pneg %p88
        $region18: #{tpu_custom_call.1} parent=11 // pred_check_branch
          %228 = sbr.rel (%p226) target = $region20
        $region19: #{tpu_custom_call.1} parent=11 // pred_region
          _
        $region20: #{tpu_custom_call.1} parent=11 // pred_fallthru
          _
        // Predicated region
        $region21: #{tpu_custom_call.1} parent=11 // pred_check
          %p229 = pneg %p109
        $region22: #{tpu_custom_call.1} parent=11 // pred_check_branch
          %231 = sbr.rel (%p229) target = $region24
        $region23: #{tpu_custom_call.1} parent=11 // pred_region
          %s233 = ssub.s32 1024, 1024
          %234 = vsyncadd [#allocation6], %s233
          %s235 = sshll.u32 [#allocation7], 4
          %s236 = int_to_ptr.vmem [resolvable:$true] %s235
          %241 = dma.hbm_to_vmem [thread:$0]  %s3, 1024, %s236, [#allocation6], 64, 64, 4
        $region24: #{tpu_custom_call.1} parent=11 // pred_fallthru
          _
        // Predicated region
        $region25: #{tpu_custom_call.1} parent=11 // pred_check
          %p242 = pneg %p130
        $region26: #{tpu_custom_call.1} parent=11 // pred_check_branch
          %244 = sbr.rel (%p242) target = $region28
        $region27: #{tpu_custom_call.1} parent=11 // pred_region
          _
        $region28: #{tpu_custom_call.1} parent=11 // pred_fallthru
          _
        // Predicated region
        $region29: #{tpu_custom_call.1} parent=11 // pred_check
          %p245 = pneg %p151
        $region30: #{tpu_custom_call.1} parent=11 // pred_check_branch
          %247 = sbr.rel (%p245) target = $region32
        $region31: #{tpu_custom_call.1} parent=11 // pred_region
          _
        $region32: #{tpu_custom_call.1} parent=11 // pred_fallthru
          _
        // Predicated region
        $region33: #{tpu_custom_call.1} parent=11 // pred_check
          %p248 = pneg %p172
        $region34: #{tpu_custom_call.1} parent=11 // pred_check_branch
          %250 = sbr.rel (%p248) target = $region36
        $region35: #{tpu_custom_call.1} parent=11 // pred_region
          _
        $region36: #{tpu_custom_call.1} parent=11 // pred_fallthru
          _
      $region12: #{tpu_custom_call.1} parent=5 // pred_fallthru
        _
      %p251 = scmp.lt.s32.totalorder %s20, 2
      // Predicated region
      $region37: #{tpu_custom_call.1} parent=5 // pred_check
        %p252 = pneg %p251
      $region38: #{tpu_custom_call.1} parent=5 // pred_check_branch
        %254 = sbr.rel (%p252) target = $region40
      $region39: #{tpu_custom_call.1} parent=5 // pred_region
        // Predicated region
        $region41: #{tpu_custom_call.1} parent=39 // pred_check
          %p255 = pneg %p40
        $region42: #{tpu_custom_call.1} parent=39 // pred_check_branch
          %257 = sbr.rel (%p255) target = $region44
        $region43: #{tpu_custom_call.1} parent=39 // pred_region
          %s258 = sand.u32 %s30, 1
          %s259 = scalar_lea.sflag [#allocation3], %s258
          %s260 = sand.u32 %s30, 1
          %s261 = smul.addr %s260, 8
          %s262 = scalar_lea.vmem [#allocation2], %s261
          %s264 = ssub.s32 128, 128
          %265 = vsyncadd %s259, %s264
          %s266 = smul.addr %s20, 128
          %s267 = scalar_lea.hbm %s0, %s266
          %s269 = sshll.u32 %s262, 4
          %s270 = int_to_ptr.vmem [resolvable:$true] %s269
          %272 = dma.hbm_to_vmem [thread:$0]  %s267, 128, %s270, %s259
        $region44: #{tpu_custom_call.1} parent=39 // pred_fallthru
          _
      $region40: #{tpu_custom_call.1} parent=5 // pred_fallthru
        _
      %p273 = scmp.le.s32.totalorder 1, %s20
      %p274 = scmp.lt.s32.totalorder %s20, 3
      %p275 = pnand %p273, %p274
      %p276 = pneg %p275
      // Predicated region
      $region45: #{tpu_custom_call.1} parent=5 // pred_check
        _
      $region46: #{tpu_custom_call.1} parent=5 // pred_check_branch
        %278 = sbr.rel (%p275) target = $region48
      $region47: #{tpu_custom_call.1} parent=5 // pred_region
        %s279 = ssub.s32 %s20, 1
        %s280 = sand.u32 %s33, 1
        %s281 = scalar_lea.sflag [#allocation3], %s280
        %s282 = sand.u32 %s33, 1
        %s283 = smul.addr %s282, 8
        %s284 = scalar_lea.vmem [#allocation2], %s283
        // Predicated region
        $region49: #{tpu_custom_call.1} parent=47 // pred_check
          %p285 = pneg %p46
        $region50: #{tpu_custom_call.1} parent=47 // pred_check_branch
          %287 = sbr.rel (%p285) target = $region52
        $region51: #{tpu_custom_call.1} parent=47 // pred_region
          %288 = dma.done %s281, 128
        $region52: #{tpu_custom_call.1} parent=47 // pred_fallthru
          _
        // Predicated region
        $region53: #{tpu_custom_call.1} parent=47 // pred_check
          %p289 = pneg %p67
        $region54: #{tpu_custom_call.1} parent=47 // pred_check_branch
          %291 = sbr.rel (%p289) target = $region56
        $region55: #{tpu_custom_call.1} parent=47 // pred_region
          %292 = dma.done [#allocation6], 1024
        $region56: #{tpu_custom_call.1} parent=47 // pred_fallthru
          _
        // Predicated region
        $region57: #{tpu_custom_call.1} parent=47 // pred_check
          %p293 = pneg %p109
        $region58: #{tpu_custom_call.1} parent=47 // pred_check_branch
          %295 = sbr.rel (%p293) target = $region60
        $region59: #{tpu_custom_call.1} parent=47 // pred_region
          %296 = dma.done [#allocation6], 1024
        $region60: #{tpu_custom_call.1} parent=47 // pred_fallthru
          _
        %s297 = sand.u32 %s33, 1
        %s298 = scalar_lea.sflag [#allocation3], %s297
        %s299 = sand.u32 %s33, 1
        %s300 = smul.addr %s299, 8
        %s301 = scalar_lea.vmem [#allocation2], %s300
        %p302 = pneg %p46
        %p303 = pneg %p43
        %p304 = pneg %p67
        %p305 = pneg %p64
        %p306 = pneg %p88
        %p307 = pneg %p85
        %p308 = pneg %p109
        %p309 = pneg %p106
        %p310 = pneg %p130
        %p311 = pneg %p127
        %p312 = pneg %p151
        %p313 = pneg %p148
        %p314 = pneg %p172
        %p315 = pneg %p169
        %p316 = pneg %p198
        %p317 = pneg %p195
        %s318 = sand.u32 %s185, 1
        %s319 = scalar_lea.sflag [#allocation4], %s318
        %s320 = sand.u32 %s185, 1
        %s321 = smul.addr %s320, 8
        %s322 = scalar_lea.vmem [#allocation8], %s321
        %v324 = vld [vmem:[%s284] sm:$0xff]
        %v325 = vpack.c.bf16 %v324, %v324
        %v326 = vld [vmem:[#allocation5] sm:$0xf]
        %v327 = vld [vmem:[#allocation5 + $0x4] sm:$0xf]
        %v328 = vld [vmem:[#allocation5 + $0x8] sm:$0xf]
        %v329 = vld [vmem:[#allocation5 + $0xc] sm:$0xf]
        %v330 = vld [vmem:[#allocation5 + $0x10] sm:$0xf]
        %v331 = vld [vmem:[#allocation5 + $0x14] sm:$0xf]
        %v332 = vld [vmem:[#allocation5 + $0x18] sm:$0xf]
        %v333 = vld [vmem:[#allocation5 + $0x1c] sm:$0xf]
        %v334 = vld [vmem:[#allocation5 + $0x20] sm:$0xf]
        %v335 = vld [vmem:[#allocation5 + $0x24] sm:$0xf]
        %v336 = vld [vmem:[#allocation5 + $0x28] sm:$0xf]
        %v337 = vld [vmem:[#allocation5 + $0x2c] sm:$0xf]
        %v338 = vld [vmem:[#allocation5 + $0x30] sm:$0xf]
        %v339 = vld [vmem:[#allocation5 + $0x34] sm:$0xf]
        %v340 = vld [vmem:[#allocation5 + $0x38] sm:$0xf]
        %v341 = vld [vmem:[#allocation5 + $0x3c] sm:$0xf]
        %v342 = vld [vmem:[%s2] sm:$0x1]
        %v344 = vlaneseq
        %v345 = vshrl.u32 %v344, 7
        %v346 = vsub.s32 0, %v345
        %v347 = vrot.slane %v342, %v346
        %v365 = vunpack.c.l.b16 %v326
        %v366 = vunpack.c.l.b16 %v327
        %v367 = vunpack.c.l.b16 %v328
        %v368 = vunpack.c.l.b16 %v329
        %v369 = vunpack.c.l.b16 %v330
        %v370 = vunpack.c.l.b16 %v331
        %v371 = vunpack.c.l.b16 %v332
        %v372 = vunpack.c.l.b16 %v333
        %v373 = vunpack.c.l.b16 %v334
        %v374 = vunpack.c.l.b16 %v335
        %v375 = vunpack.c.l.b16 %v336
        %v376 = vunpack.c.l.b16 %v337
        %v377 = vunpack.c.l.b16 %v338
        %v378 = vunpack.c.l.b16 %v339
        %v379 = vunpack.c.l.b16 %v340
        %v380 = vunpack.c.l.b16 %v341
        %v381 = vpack.c.b16 %v366, %v365
        %v382 = vpack.c.b16 %v368, %v367
        %v383 = vpack.c.b16 %v370, %v369
        %v384 = vpack.c.b16 %v372, %v371
        %v385 = vpack.c.b16 %v374, %v373
        %v386 = vpack.c.b16 %v376, %v375
        %v387 = vpack.c.b16 %v378, %v377
        %v388 = vpack.c.b16 %v380, %v379
        %397 = vmatprep.subr.bf16.mxu0 0
        %398 = vmatpush1.bf16.msra.mxu0 %v388
        %399 = vmatprep.subr.bf16.mxu0 0
        %400 = vmatpush1.bf16.msra.mxu0 %v387
        %401 = vmatprep.subr.bf16.mxu0 0
        %402 = vmatpush1.bf16.msra.mxu0 %v386
        %403 = vmatprep.subr.bf16.mxu0 0
        %404 = vmatpush1.bf16.msra.mxu0 %v385
        %405 = vmatprep.subr.bf16.mxu0 0
        %406 = vmatpush1.bf16.msra.mxu0 %v384
        %407 = vmatprep.subr.bf16.mxu0 0
        %408 = vmatpush1.bf16.msra.mxu0 %v383
        %409 = vmatprep.subr.bf16.mxu0 0
        %410 = vmatpush1.bf16.msra.mxu0 %v382
        %411 = vmatprep.subr.bf16.mxu0 0
        %412 = vmatpush1.bf16.msra.mxu0 %v381
        %413 = vmatprep.subr.bf16.mxu0 0
        %414 = vmatpush2.bf16.msra.mxu0 0
        %415 = vmatprep.subr.bf16.mxu0 0
        %416 = vmatpush2.bf16.msra.mxu0 0
        %417 = vmatprep.subr.bf16.mxu0 0
        %418 = vmatpush2.bf16.msra.mxu0 0
        %419 = vmatprep.subr.bf16.mxu0 0
        %420 = vmatpush2.bf16.msra.mxu0 0
        %421 = vmatprep.subr.bf16.mxu0 0
        %422 = vmatpush2.bf16.msra.mxu0 0
        %423 = vmatprep.subr.bf16.mxu0 0
        %424 = vmatpush2.bf16.msra.mxu0 0
        %425 = vmatprep.subr.bf16.mxu0 0
        %426 = vmatpush2.bf16.msra.mxu0 0
        %427 = vmatprep.subr.bf16.mxu0 0
        %428 = vmatpush2.bf16.msra.mxu0 0
        %429 = vmatprep.mubr.bf16.mxu0 0
        %430 = vmatmul.mubr.bf16.gmra.mxu0 %v325
        %v431 = vpop.f32.mrf.mxu0
        %v432 = vadd.f32 %v347, %v431
        %v433 = vpop.f32.mrf.mxu0
        %v434 = vpop.f32.mrf.mxu0
        %v435 = vpop.f32.mrf.mxu0
        %436 = vdwg.mxu0
        %v437 = vmul.f32 %v432, 0.5
        %v438 = vmul.f32 %v432, 0.70710677
        %v439 = verf.f32.pop %v438
        %v440 = vadd.f32 %v439, 1.0
        %v441 = vmul.f32 %v437, %v440
        %v442 = vpack.c.bf16 %v441, %v441
        %v443 = vld [vmem:[#allocation7] sm:$0xf]
        %v444 = vld [vmem:[#allocation7 + $0x4] sm:$0xf]
        %v445 = vld [vmem:[#allocation7 + $0x8] sm:$0xf]
        %v446 = vld [vmem:[#allocation7 + $0xc] sm:$0xf]
        %v447 = vld [vmem:[#allocation7 + $0x10] sm:$0xf]
        %v448 = vld [vmem:[#allocation7 + $0x14] sm:$0xf]
        %v449 = vld [vmem:[#allocation7 + $0x18] sm:$0xf]
        %v450 = vld [vmem:[#allocation7 + $0x1c] sm:$0xf]
        %v451 = vld [vmem:[#allocation7 + $0x20] sm:$0xf]
        %v452 = vld [vmem:[#allocation7 + $0x24] sm:$0xf]
        %v453 = vld [vmem:[#allocation7 + $0x28] sm:$0xf]
        %v454 = vld [vmem:[#allocation7 + $0x2c] sm:$0xf]
        %v455 = vld [vmem:[#allocation7 + $0x30] sm:$0xf]
        %v456 = vld [vmem:[#allocation7 + $0x34] sm:$0xf]
        %v457 = vld [vmem:[#allocation7 + $0x38] sm:$0xf]
        %v458 = vld [vmem:[#allocation7 + $0x3c] sm:$0xf]
        %v459 = vld [vmem:[%s4] sm:$0x1]
        %v461 = vlaneseq
        %v462 = vshrl.u32 %v461, 7
        %v463 = vsub.s32 0, %v462
        %v464 = vrot.slane %v459, %v463
        %v482 = vunpack.c.l.b16 %v443
        %v483 = vunpack.c.l.b16 %v444
        %v484 = vunpack.c.l.b16 %v445
        %v485 = vunpack.c.l.b16 %v446
        %v486 = vunpack.c.l.b16 %v447
        %v487 = vunpack.c.l.b16 %v448
        %v488 = vunpack.c.l.b16 %v449
        %v489 = vunpack.c.l.b16 %v450
        %v490 = vunpack.c.l.b16 %v451
        %v491 = vunpack.c.l.b16 %v452
        %v492 = vunpack.c.l.b16 %v453
        %v493 = vunpack.c.l.b16 %v454
        %v494 = vunpack.c.l.b16 %v455
        %v495 = vunpack.c.l.b16 %v456
        %v496 = vunpack.c.l.b16 %v457
        %v497 = vunpack.c.l.b16 %v458
        %v498 = vpack.c.b16 %v483, %v482
        %v499 = vpack.c.b16 %v485, %v484
        %v500 = vpack.c.b16 %v487, %v486
        %v501 = vpack.c.b16 %v489, %v488
        %v502 = vpack.c.b16 %v491, %v490
        %v503 = vpack.c.b16 %v493, %v492
        %v504 = vpack.c.b16 %v495, %v494
        %v505 = vpack.c.b16 %v497, %v496
        %514 = vmatprep.subr.bf16.mxu0 0
        %515 = vmatpush1.bf16.msra.mxu0 %v505
        %516 = vmatprep.subr.bf16.mxu0 0
        %517 = vmatpush1.bf16.msra.mxu0 %v504
        %518 = vmatprep.subr.bf16.mxu0 0
        %519 = vmatpush1.bf16.msra.mxu0 %v503
        %520 = vmatprep.subr.bf16.mxu0 0
        %521 = vmatpush1.bf16.msra.mxu0 %v502
        %522 = vmatprep.subr.bf16.mxu0 0
        %523 = vmatpush1.bf16.msra.mxu0 %v501
        %524 = vmatprep.subr.bf16.mxu0 0
        %525 = vmatpush1.bf16.msra.mxu0 %v500
        %526 = vmatprep.subr.bf16.mxu0 0
        %527 = vmatpush1.bf16.msra.mxu0 %v499
        %528 = vmatprep.subr.bf16.mxu0 0
        %529 = vmatpush1.bf16.msra.mxu0 %v498
        %530 = vmatprep.subr.bf16.mxu0 0
        %531 = vmatpush2.bf16.msra.mxu0 0
        %532 = vmatprep.subr.bf16.mxu0 0
        %533 = vmatpush2.bf16.msra.mxu0 0
        %534 = vmatprep.subr.bf16.mxu0 0
        %535 = vmatpush2.bf16.msra.mxu0 0
        %536 = vmatprep.subr.bf16.mxu0 0
        %537 = vmatpush2.bf16.msra.mxu0 0
        %538 = vmatprep.subr.bf16.mxu0 0
        %539 = vmatpush2.bf16.msra.mxu0 0
        %540 = vmatprep.subr.bf16.mxu0 0
        %541 = vmatpush2.bf16.msra.mxu0 0
        %542 = vmatprep.subr.bf16.mxu0 0
        %543 = vmatpush2.bf16.msra.mxu0 0
        %544 = vmatprep.subr.bf16.mxu0 0
        %545 = vmatpush2.bf16.msra.mxu0 0
        %546 = vmatprep.mubr.bf16.mxu0 0
        %547 = vmatmul.mubr.bf16.gmra.mxu0 %v442
        %v548 = vpop.f32.mrf.mxu0
        %v549 = vadd.f32 %v464, %v548
        %v550 = vpop.f32.mrf.mxu0
        %v551 = vpop.f32.mrf.mxu0
        %v552 = vpop.f32.mrf.mxu0
        %553 = vdwg.mxu0
        %v554 = vadd.f32 %v549, %v324
        %v555 = vld [vmem:[%s5] sm:$0x1]
        %v556 = vld [vmem:[%s6] sm:$0x1]
        %v557 = vlaneseq
        %v558 = vand.u32 %v557, 127
        %vm559 = vcmp.lt.s32.totalorder %v558, 32
        %v560 = vsel %vm559, 1, 0
        %v561 = vcvt.s32.f32 %v560
        %v562 = vmul.f32 %v554, %v561
        %563 = vadd.xlane.f32.xlu0 %v562
        %v564 = vpop.xlane.xlu0 %563
        %v565 = vmul.f32 %v564, 0.03125
        %v566 = vsub.f32 %v562, %v565
        %v567 = vmul.f32 %v566, %v561
        %v568 = vmul.f32 %v567, %v567
        %569 = vadd.xlane.f32.xlu0 %v568
        %v570 = vpop.xlane.xlu0 %569
        %v571 = vmul.f32 %v570, 0.03125
        %v572 = vadd.f32 %v571, 1e-12
        %v573 = vrsqrt.pop %v572
        %v574 = vmul.f32 %v567, %v573
        %v576 = vlaneseq
        %v577 = vshrl.u32 %v576, 7
        %v578 = vsub.s32 0, %v577
        %v579 = vrot.slane %v555, %v578
        %v581 = vmul.f32 %v574, %v579
        %v583 = vlaneseq
        %v584 = vshrl.u32 %v583, 7
        %v585 = vsub.s32 0, %v584
        %v586 = vrot.slane %v556, %v585
        %v588 = vadd.f32 %v581, %v586
        %589 = vst [vmem:[%s322] sm:$0xff] %v588
        %s590 = sand.u32 %s185, 1
        %s591 = scalar_lea.sflag [#allocation4], %s590
        %s592 = sand.u32 %s185, 1
        %s593 = smul.addr %s592, 8
        %s594 = scalar_lea.vmem [#allocation8], %s593
        // Predicated region
        $region61: #{tpu_custom_call.1} parent=47 // pred_check
          %p595 = pneg %p195
        $region62: #{tpu_custom_call.1} parent=47 // pred_check_branch
          %597 = sbr.rel (%p595) target = $region64
        $region63: #{tpu_custom_call.1} parent=47 // pred_region
          %s599 = ssub.s32 128, 128
          %600 = vsyncadd %s591, %s599
          %s601 = smul.addr %s25, 128
          %s602 = scalar_lea.hbm %s7, %s601
          %s604 = sshll.u32 %s594, 4
          %s605 = int_to_ptr.vmem [resolvable:$true] %s604
          %607 = dma.vmem_to_hbm [thread:$0]  %s605, 128, %s602, %s591
        $region64: #{tpu_custom_call.1} parent=47 // pred_fallthru
          _
      $region48: #{tpu_custom_call.1} parent=5 // pred_fallthru
        _
      %p608 = scmp.le.s32.totalorder 2, %s20
      // Predicated region
      $region65: #{tpu_custom_call.1} parent=5 // pred_check
        %p609 = pneg %p608
      $region66: #{tpu_custom_call.1} parent=5 // pred_check_branch
        %611 = sbr.rel (%p609) target = $region68
      $region67: #{tpu_custom_call.1} parent=5 // pred_region
        %s612 = ssub.s32 %s20, 2
        // Predicated region
        $region69: #{tpu_custom_call.1} parent=67 // pred_check
          %p613 = pneg %p201
        $region70: #{tpu_custom_call.1} parent=67 // pred_check_branch
          %615 = sbr.rel (%p613) target = $region72
        $region71: #{tpu_custom_call.1} parent=67 // pred_region
          %s616 = sand.u32 %s186, 1
          %s617 = scalar_lea.sflag [#allocation4], %s616
          %s618 = sand.u32 %s186, 1
          %s619 = smul.addr %s618, 8
          %s620 = scalar_lea.vmem [#allocation8], %s619
          %621 = dma.done %s617, 128
        $region72: #{tpu_custom_call.1} parent=67 // pred_fallthru
          _
      $region68: #{tpu_custom_call.1} parent=5 // pred_fallthru
        _
    $region6: #{tpu_custom_call.1} parent=1 // loop_footer
      %s24 = sadd.s32 1, %s20
    $region7: #{tpu_custom_call.1} parent=1 // loop_footer_branch
      %19 = sbr.rel target = $region3
    $region8: #{tpu_custom_call.1} parent=1 // loop_exit
      _
    %622 = vsyncpa [#allocation3], 1
    %s623 = scalar_lea.sflag [#allocation3], 1
    %624 = vsyncpa %s623, 1
    %625 = vsyncpa [#allocation6], 1
    %626 = vsyncpa [#allocation4], 1
    %s627 = scalar_lea.sflag [#allocation4], 1
    %628 = vsyncpa %s627, 1

// kernel: tpu_custom_call.1
$region0: #{tpu_custom_call.1}
  #allocation0 [shape = 'u32[]', space=smem, size = 0x4, offset = 0x4, fixed_abs, tag = 'smem constant byte address 0x4 - core index']
  #allocation1 [shape = 'u32[144,128]{1,0:T(1,128)}', space=vmem, size = 0x12000, scoped, tag = 'internal scratch']
  %s0 = inlined_call_operand.hbm [shape: f32[16,128], index: 0, kind: input, shape index: {}]
  %s1 = inlined_call_operand.hbm [shape: bf16[128,128], index: 1, kind: input, shape index: {}]
  %s2 = inlined_call_operand.vmem [shape: f32[1,128], index: 2, kind: input, shape index: {}]
  %s3 = inlined_call_operand.hbm [shape: bf16[128,128], index: 3, kind: input, shape index: {}]
  %s4 = inlined_call_operand.vmem [shape: f32[1,128], index: 4, kind: input, shape index: {}]
  %s5 = inlined_call_operand.vmem [shape: f32[1,128], index: 5, kind: input, shape index: {}]
  %s6 = inlined_call_operand.vmem [shape: f32[1,128], index: 6, kind: input, shape index: {}]
  %s7 = inlined_call_operand.hbm [shape: f32[16,128], index: 7, kind: output, shape index: {}]
  %s8 = sld [smem:[#allocation0]]
  $region73: #{tpu_custom_call.1} parent=0
    _
  %s10 = ssub.s32 1, %s8
  %s11 = scalar_select 0, %s10, %s8
  $region1: #{tpu_custom_call.1} parent=0
    #allocation2 [shape = 'u8[8192]{0}', space=vmem, size = 0x2000, scoped, tag = 'input window, operand 0']
    #allocation3 [shape = 's32[2]{0}', space=sflag, size = 0x8, scoped, tag = 'scoped memory for tpu_custom_call.1']
    #allocation4 [shape = 's32[2]{0}', space=sflag, size = 0x8, scoped, tag = 'scoped memory for tpu_custom_call.1']
    #allocation5 [shape = 'u8[32768]{0}', space=vmem, size = 0x8000, scoped, tag = 'input window, operand 1, single buffered']
    #allocation6 [shape = 's32[1]{0}', space=sflag, size = 0x4, scoped, tag = 'scoped memory for tpu_custom_call.1']
    #allocation7 [shape = 'u8[32768]{0}', space=vmem, size = 0x8000, scoped, tag = 'input window, operand 3, single buffered']
    #allocation8 [shape = 'u8[8192]{0}', space=vmem, size = 0x2000, scoped, tag = 'output window, operand 0']
    %12 = vsyncpa [#allocation3], 0
    %s13 = scalar_lea.sflag [#allocation3], 1
    %14 = vsyncpa %s13, 0
    %15 = vsyncpa [#allocation6], 0
    %16 = vsyncpa [#allocation4], 0
    %s17 = scalar_lea.sflag [#allocation4], 1
    %18 = vsyncpa %s17, 0
    loop: start=0, step=1, limit=4
    $region2: #{tpu_custom_call.1} parent=1 // loop_pre_header
      _
    $region3: #{tpu_custom_call.1} parent=1 // loop_header
      %s20 = sphi 0, %s24
      %p21 = scmp.ge.s32.totalorder %s20, 4
      %s30 = sphi 0, %s32
      %s33 = sphi 0, %s30
      %s34 = sphi 0, %s33
      %s50 = sphi 0, %s34
      %s54 = sphi 0, %s54
      %s56 = sphi 0, %s54
      %s57 = sphi 0, %s56
      %s71 = sphi 0, %s57
      %s75 = sphi 0, %s75
      %s77 = sphi 0, %s75
      %s78 = sphi 0, %s77
      %s92 = sphi 0, %s78
      %s96 = sphi 0, %s96
      %s98 = sphi 0, %s96
      %s99 = sphi 0, %s98
      %s113 = sphi 0, %s99
      %s117 = sphi 0, %s117
      %s119 = sphi 0, %s117
      %s120 = sphi 0, %s119
      %s134 = sphi 0, %s120
      %s138 = sphi 0, %s138
      %s140 = sphi 0, %s138
      %s141 = sphi 0, %s140
      %s155 = sphi 0, %s141
      %s159 = sphi 0, %s159
      %s161 = sphi 0, %s159
      %s162 = sphi 0, %s161
      %s176 = sphi 0, %s162
      %s182 = sphi 0, %s184
      %s185 = sphi 0, %s182
      %s186 = sphi 0, %s185
      %s202 = sphi 0, %s186
    $region4: #{tpu_custom_call.1} parent=1 // loop_header_branch
      %23 = sbr.rel (%p21) target = $region8
    $region5: #{tpu_custom_call.1} parent=1 // loop_body
      %s25 = ssub.s32 %s20, 1
      %s26 = ssub.s32 %s20, 2
      %s27 = sadd.s32 %s20, 1
      %s28 = ssub.s32 %s20, %s27
      %p29 = scmp.eq.s32.totalorder %s28, 0
      %s31 = sadd.s32 %s30, 1
      %s32 = scalar_select %p29, %s30, %s31
      %p35 = pneg %p29
      %p36 = scmp.eq.s32.totalorder %s20, 1
      %p37 = por %p35, %p36
      %p38 = scmp.ne.s32.totalorder %s30, %s33
      %p39 = scmp.eq.s32.totalorder %s20, 0
      %p40 = por %p38, %p39
      %p41 = scmp.ne.s32.totalorder %s30, %s33
      %p42 = scmp.eq.s32.totalorder %s25, 1
      %p43 = por %p41, %p42
      %p44 = scmp.ne.s32.totalorder %s33, %s34
      %p45 = scmp.eq.s32.totalorder %s25, 0
      %p46 = por %p44, %p45
      %p47 = scmp.ne.s32.totalorder %s33, %s34
      %p48 = scmp.eq.s32.totalorder %s26, 1
      %p49 = por %p47, %p48
      %p51 = scmp.ne.s32.totalorder %s34, %s50
      %p52 = scmp.eq.s32.totalorder %s26, 0
      %p53 = por %p51, %p52
      %s55 = sadd.s32 %s54, 1
      %p58 = scmp.eq.s32.totalorder %s20, 1
      %p59 = scmp.ne.s32.totalorder %s54, %s56
      %p60 = scmp.eq.s32.totalorder %s20, 0
      %p61 = por %p59, %p60
      %p62 = scmp.ne.s32.totalorder %s54, %s56
      %p63 = scmp.eq.s32.totalorder %s25, 1
      %p64 = por %p62, %p63
      %p65 = scmp.ne.s32.totalorder %s56, %s57
      %p66 = scmp.eq.s32.totalorder %s25, 0
      %p67 = por %p65, %p66
      %p68 = scmp.ne.s32.totalorder %s56, %s57
      %p69 = scmp.eq.s32.totalorder %s26, 1
      %p70 = por %p68, %p69
      %p72 = scmp.ne.s32.totalorder %s57, %s71
      %p73 = scmp.eq.s32.totalorder %s26, 0
      %p74 = por %p72, %p73
      %s76 = sadd.s32 %s75, 1
      %p79 = scmp.eq.s32.totalorder %s20, 1
      %p80 = scmp.ne.s32.totalorder %s75, %s77
      %p81 = scmp.eq.s32.totalorder %s20, 0
      %p82 = por %p80, %p81
      %p83 = scmp.ne.s32.totalorder %s75, %s77
      %p84 = scmp.eq.s32.totalorder %s25, 1
      %p85 = por %p83, %p84
      %p86 = scmp.ne.s32.totalorder %s77, %s78
      %p87 = scmp.eq.s32.totalorder %s25, 0
      %p88 = por %p86, %p87
      %p89 = scmp.ne.s32.totalorder %s77, %s78
      %p90 = scmp.eq.s32.totalorder %s26, 1
      %p91 = por %p89, %p90
      %p93 = scmp.ne.s32.totalorder %s78, %s92
      %p94 = scmp.eq.s32.totalorder %s26, 0
      %p95 = por %p93, %p94
      %s97 = sadd.s32 %s96, 1
      %p100 = scmp.eq.s32.totalorder %s20, 1
      %p101 = scmp.ne.s32.totalorder %s96, %s98
      %p102 = scmp.eq.s32.totalorder %s20, 0
      %p103 = por %p101, %p102
      %p104 = scmp.ne.s32.totalorder %s96, %s98
      %p105 = scmp.eq.s32.totalorder %s25, 1
      %p106 = por %p104, %p105
      %p107 = scmp.ne.s32.totalorder %s98, %s99
      %p108 = scmp.eq.s32.totalorder %s25, 0
      %p109 = por %p107, %p108
      %p110 = scmp.ne.s32.totalorder %s98, %s99
      %p111 = scmp.eq.s32.totalorder %s26, 1
      %p112 = por %p110, %p111
      %p114 = scmp.ne.s32.totalorder %s99, %s113
      %p115 = scmp.eq.s32.totalorder %s26, 0
      %p116 = por %p114, %p115
      %s118 = sadd.s32 %s117, 1
      %p121 = scmp.eq.s32.totalorder %s20, 1
      %p122 = scmp.ne.s32.totalorder %s117, %s119
      %p123 = scmp.eq.s32.totalorder %s20, 0
      %p124 = por %p122, %p123
      %p125 = scmp.ne.s32.totalorder %s117, %s119
      %p126 = scmp.eq.s32.totalorder %s25, 1
      %p127 = por %p125, %p126
      %p128 = scmp.ne.s32.totalorder %s119, %s120
      %p129 = scmp.eq.s32.totalorder %s25, 0
      %p130 = por %p128, %p129
      %p131 = scmp.ne.s32.totalorder %s119, %s120
      %p132 = scmp.eq.s32.totalorder %s26, 1
      %p133 = por %p131, %p132
      %p135 = scmp.ne.s32.totalorder %s120, %s134
      %p136 = scmp.eq.s32.totalorder %s26, 0
      %p137 = por %p135, %p136
      %s139 = sadd.s32 %s138, 1
      %p142 = scmp.eq.s32.totalorder %s20, 1
      %p143 = scmp.ne.s32.totalorder %s138, %s140
      %p144 = scmp.eq.s32.totalorder %s20, 0
      %p145 = por %p143, %p144
      %p146 = scmp.ne.s32.totalorder %s138, %s140
      %p147 = scmp.eq.s32.totalorder %s25, 1
      %p148 = por %p146, %p147
      %p149 = scmp.ne.s32.totalorder %s140, %s141
      %p150 = scmp.eq.s32.totalorder %s25, 0
      %p151 = por %p149, %p150
      %p152 = scmp.ne.s32.totalorder %s140, %s141
      %p153 = scmp.eq.s32.totalorder %s26, 1
      %p154 = por %p152, %p153
      %p156 = scmp.ne.s32.totalorder %s141, %s155
      %p157 = scmp.eq.s32.totalorder %s26, 0
      %p158 = por %p156, %p157
      %s160 = sadd.s32 %s159, 1
      %p163 = scmp.eq.s32.totalorder %s20, 1
      %p164 = scmp.ne.s32.totalorder %s159, %s161
      %p165 = scmp.eq.s32.totalorder %s20, 0
      %p166 = por %p164, %p165
      %p167 = scmp.ne.s32.totalorder %s159, %s161
      %p168 = scmp.eq.s32.totalorder %s25, 1
      %p169 = por %p167, %p168
      %p170 = scmp.ne.s32.totalorder %s161, %s162
      %p171 = scmp.eq.s32.totalorder %s25, 0
      %p172 = por %p170, %p171
      %p173 = scmp.ne.s32.totalorder %s161, %s162
      %p174 = scmp.eq.s32.totalorder %s26, 1
      %p175 = por %p173, %p174
      %p177 = scmp.ne.s32.totalorder %s162, %s176
      %p178 = scmp.eq.s32.totalorder %s26, 0
      %p179 = por %p177, %p178
      %s180 = ssub.s32 %s20, %s27
      %p181 = scmp.eq.s32.totalorder %s180, 0
      %s183 = sadd.s32 %s182, 1
      %s184 = scalar_select %p181, %s182, %s183
      %p187 = pneg %p181
      %p188 = scmp.eq.s32.totalorder %s20, 1
      %p189 = por %p187, %p188
      %p190 = scmp.ne.s32.totalorder %s182, %s185
      %p191 = scmp.eq.s32.totalorder %s20, 0
      %p192 = por %p190, %p191
      %p193 = scmp.ne.s32.totalorder %s182, %s185
      %p194 = scmp.eq.s32.totalorder %s25, 1
      %p195 = por %p193, %p194
      %p196 = scmp.ne.s32.totalorder %s185, %s186
      %p197 = scmp.eq.s32.totalorder %s25, 0
      %p198 = por %p196, %p197
      %p199 = scmp.ne.s32.totalorder %s185, %s186
      %p200 = scmp.eq.s32.totalorder %s26, 1
      %p201 = por %p199, %p200
      %p203 = scmp.ne.s32.totalorder %s186, %s202
      %p204 = scmp.eq.s32.totalorder %s26, 0
      %p205 = por %p203, %p204
      %p206 = scmp.le.s32.totalorder 1, %s20
      %p207 = scmp.lt.s32.totalorder %s20, 3
      %p208 = pnand %p206, %p207
      %p209 = pneg %p208
      // Predicated region
      $region9: #{tpu_custom_call.1} parent=5 // pred_check
        _
      $region10: #{tpu_custom_call.1} parent=5 // pred_check_branch
        %211 = sbr.rel (%p208) target = $region12
      $region11: #{tpu_custom_call.1} parent=5 // pred_region
        %s212 = ssub.s32 %s20, 1
        // Predicated region
        $region13: #{tpu_custom_call.1} parent=11 // pred_check
          %p213 = pneg %p67
        $region14: #{tpu_custom_call.1} parent=11 // pred_check_branch
          %215 = sbr.rel (%p213) target = $region16
        $region15: #{tpu_custom_call.1} parent=11 // pred_region
          %s217 = ssub.s32 1024, 1024
          %218 = vsyncadd [#allocation6], %s217
          %s219 = sshll.u32 [#allocation5], 4
          %s220 = int_to_ptr.vmem [resolvable:$true] %s219
          %225 = dma.hbm_to_vmem [thread:$0]  %s1, 1024, %s220, [#allocation6], 64, 64, 4
        $region16: #{tpu_custom_call.1} parent=11 // pred_fallthru
          _
        // Predicated region
        $region17: #{tpu_custom_call.1} parent=11 // pred_check
          %p226 = pneg %p88
        $region18: #{tpu_custom_call.1} parent=11 // pred_check_branch
          %228 = sbr.rel (%p226) target = $region20
        $region19: #{tpu_custom_call.1} parent=11 // pred_region
          _
        $region20: #{tpu_custom_call.1} parent=11 // pred_fallthru
          _
        // Predicated region
        $region21: #{tpu_custom_call.1} parent=11 // pred_check
          %p229 = pneg %p109
        $region22: #{tpu_custom_call.1} parent=11 // pred_check_branch
          %231 = sbr.rel (%p229) target = $region24
        $region23: #{tpu_custom_call.1} parent=11 // pred_region
          %s233 = ssub.s32 1024, 1024
          %234 = vsyncadd [#allocation6], %s233
          %s235 = sshll.u32 [#allocation7], 4
          %s236 = int_to_ptr.vmem [resolvable:$true] %s235
          %241 = dma.hbm_to_vmem [thread:$0]  %s3, 1024, %s236, [#allocation6], 64, 64, 4
        $region24: #{tpu_custom_call.1} parent=11 // pred_fallthru
          _
        // Predicated region
        $region25: #{tpu_custom_call.1} parent=11 // pred_check
          %p242 = pneg %p130
        $region26: #{tpu_custom_call.1} parent=11 // pred_check_branch
          %244 = sbr.rel (%p242) target = $region28
        $region27: #{tpu_custom_call.1} parent=11 // pred_region
          _
        $region28: #{tpu_custom_call.1} parent=11 // pred_fallthru
          _
        // Predicated region
        $region29: #{tpu_custom_call.1} parent=11 // pred_check
          %p245 = pneg %p151
        $region30: #{tpu_custom_call.1} parent=11 // pred_check_branch
          %247 = sbr.rel (%p245) target = $region32
        $region31: #{tpu_custom_call.1} parent=11 // pred_region
          _
        $region32: #{tpu_custom_call.1} parent=11 // pred_fallthru
          _
        // Predicated region
        $region33: #{tpu_custom_call.1} parent=11 // pred_check
          %p248 = pneg %p172
        $region34: #{tpu_custom_call.1} parent=11 // pred_check_branch
          %250 = sbr.rel (%p248) target = $region36
        $region35: #{tpu_custom_call.1} parent=11 // pred_region
          _
        $region36: #{tpu_custom_call.1} parent=11 // pred_fallthru
          _
      $region12: #{tpu_custom_call.1} parent=5 // pred_fallthru
        _
      %p251 = scmp.lt.s32.totalorder %s20, 2
      // Predicated region
      $region37: #{tpu_custom_call.1} parent=5 // pred_check
        %p252 = pneg %p251
      $region38: #{tpu_custom_call.1} parent=5 // pred_check_branch
        %254 = sbr.rel (%p252) target = $region40
      $region39: #{tpu_custom_call.1} parent=5 // pred_region
        // Predicated region
        $region41: #{tpu_custom_call.1} parent=39 // pred_check
          %p255 = pneg %p40
        $region42: #{tpu_custom_call.1} parent=39 // pred_check_branch
          %257 = sbr.rel (%p255) target = $region44
        $region43: #{tpu_custom_call.1} parent=39 // pred_region
          %s258 = sand.u32 %s30, 1
          %s259 = scalar_lea.sflag [#allocation3], %s258
          %s260 = sand.u32 %s30, 1
          %s261 = smul.addr %s260, 8
          %s262 = scalar_lea.vmem [#allocation2], %s261
          %s264 = ssub.s32 128, 128
          %265 = vsyncadd %s259, %s264
          %s266 = smul.addr %s20, 128
          %s267 = scalar_lea.hbm %s0, %s266
          %s269 = sshll.u32 %s262, 4
          %s270 = int_to_ptr.vmem [resolvable:$true] %s269
          %272 = dma.hbm_to_vmem [thread:$0]  %s267, 128, %s270, %s259
        $region44: #{tpu_custom_call.1} parent=39 // pred_fallthru
          _
      $region40: #{tpu_custom_call.1} parent=5 // pred_fallthru
        _
      %p273 = scmp.le.s32.totalorder 1, %s20
      %p274 = scmp.lt.s32.totalorder %s20, 3
      %p275 = pnand %p273, %p274
      %p276 = pneg %p275
      // Predicated region
      $region45: #{tpu_custom_call.1} parent=5 // pred_check
        _
      $region46: #{tpu_custom_call.1} parent=5 // pred_check_branch
        %278 = sbr.rel (%p275) target = $region48
      $region47: #{tpu_custom_call.1} parent=5 // pred_region
        %s279 = ssub.s32 %s20, 1
        %s280 = sand.u32 %s33, 1
        %s281 = scalar_lea.sflag [#allocation3], %s280
        %s282 = sand.u32 %s33, 1
        %s283 = smul.addr %s282, 8
        %s284 = scalar_lea.vmem [#allocation2], %s283
        // Predicated region
        $region49: #{tpu_custom_call.1} parent=47 // pred_check
          %p285 = pneg %p46
        $region50: #{tpu_custom_call.1} parent=47 // pred_check_branch
          %287 = sbr.rel (%p285) target = $region52
        $region51: #{tpu_custom_call.1} parent=47 // pred_region
          %288 = dma.done %s281, 128
        $region52: #{tpu_custom_call.1} parent=47 // pred_fallthru
          _
        // Predicated region
        $region53: #{tpu_custom_call.1} parent=47 // pred_check
          %p289 = pneg %p67
        $region54: #{tpu_custom_call.1} parent=47 // pred_check_branch
          %291 = sbr.rel (%p289) target = $region56
        $region55: #{tpu_custom_call.1} parent=47 // pred_region
          %292 = dma.done [#allocation6], 1024
        $region56: #{tpu_custom_call.1} parent=47 // pred_fallthru
          _
        // Predicated region
        $region57: #{tpu_custom_call.1} parent=47 // pred_check
          %p293 = pneg %p109
        $region58: #{tpu_custom_call.1} parent=47 // pred_check_branch
          %295 = sbr.rel (%p293) target = $region60
        $region59: #{tpu_custom_call.1} parent=47 // pred_region
          %296 = dma.done [#allocation6], 1024
        $region60: #{tpu_custom_call.1} parent=47 // pred_fallthru
          _
        %s297 = sand.u32 %s33, 1
        %s298 = scalar_lea.sflag [#allocation3], %s297
        %s299 = sand.u32 %s33, 1
        %s300 = smul.addr %s299, 8
        %s301 = scalar_lea.vmem [#allocation2], %s300
        %p302 = pneg %p46
        %p303 = pneg %p43
        %p304 = pneg %p67
        %p305 = pneg %p64
        %p306 = pneg %p88
        %p307 = pneg %p85
        %p308 = pneg %p109
        %p309 = pneg %p106
        %p310 = pneg %p130
        %p311 = pneg %p127
        %p312 = pneg %p151
        %p313 = pneg %p148
        %p314 = pneg %p172
        %p315 = pneg %p169
        %p316 = pneg %p198
        %p317 = pneg %p195
        %s318 = sand.u32 %s185, 1
        %s319 = scalar_lea.sflag [#allocation4], %s318
        %s320 = sand.u32 %s185, 1
        %s321 = smul.addr %s320, 8
        %s322 = scalar_lea.vmem [#allocation8], %s321
        %v324 = vld [vmem:[%s284] sm:$0xff]
        %v325 = vpack.c.bf16 %v324, %v324
        %v326 = vld [vmem:[#allocation5] sm:$0xf]
        %v327 = vld [vmem:[#allocation5 + $0x4] sm:$0xf]
        %v328 = vld [vmem:[#allocation5 + $0x8] sm:$0xf]
        %v329 = vld [vmem:[#allocation5 + $0xc] sm:$0xf]
        %v330 = vld [vmem:[#allocation5 + $0x10] sm:$0xf]
        %v331 = vld [vmem:[#allocation5 + $0x14] sm:$0xf]
        %v332 = vld [vmem:[#allocation5 + $0x18] sm:$0xf]
        %v333 = vld [vmem:[#allocation5 + $0x1c] sm:$0xf]
        %v334 = vld [vmem:[#allocation5 + $0x20] sm:$0xf]
        %v335 = vld [vmem:[#allocation5 + $0x24] sm:$0xf]
        %v336 = vld [vmem:[#allocation5 + $0x28] sm:$0xf]
        %v337 = vld [vmem:[#allocation5 + $0x2c] sm:$0xf]
        %v338 = vld [vmem:[#allocation5 + $0x30] sm:$0xf]
        %v339 = vld [vmem:[#allocation5 + $0x34] sm:$0xf]
        %v340 = vld [vmem:[#allocation5 + $0x38] sm:$0xf]
        %v341 = vld [vmem:[#allocation5 + $0x3c] sm:$0xf]
        %v342 = vld [vmem:[%s2] sm:$0x1]
        %v344 = vlaneseq
        %v345 = vshrl.u32 %v344, 7
        %v346 = vsub.s32 0, %v345
        %v347 = vrot.slane %v342, %v346
        %v365 = vunpack.c.l.b16 %v326
        %v366 = vunpack.c.l.b16 %v327
        %v367 = vunpack.c.l.b16 %v328
        %v368 = vunpack.c.l.b16 %v329
        %v369 = vunpack.c.l.b16 %v330
        %v370 = vunpack.c.l.b16 %v331
        %v371 = vunpack.c.l.b16 %v332
        %v372 = vunpack.c.l.b16 %v333
        %v373 = vunpack.c.l.b16 %v334
        %v374 = vunpack.c.l.b16 %v335
        %v375 = vunpack.c.l.b16 %v336
        %v376 = vunpack.c.l.b16 %v337
        %v377 = vunpack.c.l.b16 %v338
        %v378 = vunpack.c.l.b16 %v339
        %v379 = vunpack.c.l.b16 %v340
        %v380 = vunpack.c.l.b16 %v341
        %v381 = vpack.c.b16 %v366, %v365
        %v382 = vpack.c.b16 %v368, %v367
        %v383 = vpack.c.b16 %v370, %v369
        %v384 = vpack.c.b16 %v372, %v371
        %v385 = vpack.c.b16 %v374, %v373
        %v386 = vpack.c.b16 %v376, %v375
        %v387 = vpack.c.b16 %v378, %v377
        %v388 = vpack.c.b16 %v380, %v379
        %397 = vmatprep.subr.bf16.mxu0 0
        %398 = vmatpush1.bf16.msra.mxu0 %v388
        %399 = vmatprep.subr.bf16.mxu0 0
        %400 = vmatpush1.bf16.msra.mxu0 %v387
        %401 = vmatprep.subr.bf16.mxu0 0
        %402 = vmatpush1.bf16.msra.mxu0 %v386
        %403 = vmatprep.subr.bf16.mxu0 0
        %404 = vmatpush1.bf16.msra.mxu0 %v385
        %405 = vmatprep.subr.bf16.mxu0 0
        %406 = vmatpush1.bf16.msra.mxu0 %v384
        %407 = vmatprep.subr.bf16.mxu0 0
        %408 = vmatpush1.bf16.msra.mxu0 %v383
        %409 = vmatprep.subr.bf16.mxu0 0
        %410 = vmatpush1.bf16.msra.mxu0 %v382
        %411 = vmatprep.subr.bf16.mxu0 0
        %412 = vmatpush1.bf16.msra.mxu0 %v381
        %413 = vmatprep.subr.bf16.mxu0 0
        %414 = vmatpush2.bf16.msra.mxu0 0
        %415 = vmatprep.subr.bf16.mxu0 0
        %416 = vmatpush2.bf16.msra.mxu0 0
        %417 = vmatprep.subr.bf16.mxu0 0
        %418 = vmatpush2.bf16.msra.mxu0 0
        %419 = vmatprep.subr.bf16.mxu0 0
        %420 = vmatpush2.bf16.msra.mxu0 0
        %421 = vmatprep.subr.bf16.mxu0 0
        %422 = vmatpush2.bf16.msra.mxu0 0
        %423 = vmatprep.subr.bf16.mxu0 0
        %424 = vmatpush2.bf16.msra.mxu0 0
        %425 = vmatprep.subr.bf16.mxu0 0
        %426 = vmatpush2.bf16.msra.mxu0 0
        %427 = vmatprep.subr.bf16.mxu0 0
        %428 = vmatpush2.bf16.msra.mxu0 0
        %429 = vmatprep.mubr.bf16.mxu0 0
        %430 = vmatmul.mubr.bf16.gmra.mxu0 %v325
        %v431 = vpop.f32.mrf.mxu0
        %v432 = vadd.f32 %v347, %v431
        %v433 = vpop.f32.mrf.mxu0
        %v434 = vpop.f32.mrf.mxu0
        %v435 = vpop.f32.mrf.mxu0
        %436 = vdwg.mxu0
        %v437 = vmul.f32 %v432, 0.5
        %v438 = vmul.f32 %v432, 0.70710677
        %v439 = verf.f32.pop %v438
        %v440 = vadd.f32 %v439, 1.0
        %v441 = vmul.f32 %v437, %v440
        %v442 = vpack.c.bf16 %v441, %v441
        %v443 = vld [vmem:[#allocation7] sm:$0xf]
        %v444 = vld [vmem:[#allocation7 + $0x4] sm:$0xf]
        %v445 = vld [vmem:[#allocation7 + $0x8] sm:$0xf]
        %v446 = vld [vmem:[#allocation7 + $0xc] sm:$0xf]
        %v447 = vld [vmem:[#allocation7 + $0x10] sm:$0xf]
        %v448 = vld [vmem:[#allocation7 + $0x14] sm:$0xf]
        %v449 = vld [vmem:[#allocation7 + $0x18] sm:$0xf]
        %v450 = vld [vmem:[#allocation7 + $0x1c] sm:$0xf]
        %v451 = vld [vmem:[#allocation7 + $0x20] sm:$0xf]
        %v452 = vld [vmem:[#allocation7 + $0x24] sm:$0xf]
        %v453 = vld [vmem:[#allocation7 + $0x28] sm:$0xf]
        %v454 = vld [vmem:[#allocation7 + $0x2c] sm:$0xf]
        %v455 = vld [vmem:[#allocation7 + $0x30] sm:$0xf]
        %v456 = vld [vmem:[#allocation7 + $0x34] sm:$0xf]
        %v457 = vld [vmem:[#allocation7 + $0x38] sm:$0xf]
        %v458 = vld [vmem:[#allocation7 + $0x3c] sm:$0xf]
        %v459 = vld [vmem:[%s4] sm:$0x1]
        %v461 = vlaneseq
        %v462 = vshrl.u32 %v461, 7
        %v463 = vsub.s32 0, %v462
        %v464 = vrot.slane %v459, %v463
        %v482 = vunpack.c.l.b16 %v443
        %v483 = vunpack.c.l.b16 %v444
        %v484 = vunpack.c.l.b16 %v445
        %v485 = vunpack.c.l.b16 %v446
        %v486 = vunpack.c.l.b16 %v447
        %v487 = vunpack.c.l.b16 %v448
        %v488 = vunpack.c.l.b16 %v449
        %v489 = vunpack.c.l.b16 %v450
        %v490 = vunpack.c.l.b16 %v451
        %v491 = vunpack.c.l.b16 %v452
        %v492 = vunpack.c.l.b16 %v453
        %v493 = vunpack.c.l.b16 %v454
        %v494 = vunpack.c.l.b16 %v455
        %v495 = vunpack.c.l.b16 %v456
        %v496 = vunpack.c.l.b16 %v457
        %v497 = vunpack.c.l.b16 %v458
        %v498 = vpack.c.b16 %v483, %v482
        %v499 = vpack.c.b16 %v485, %v484
        %v500 = vpack.c.b16 %v487, %v486
        %v501 = vpack.c.b16 %v489, %v488
        %v502 = vpack.c.b16 %v491, %v490
        %v503 = vpack.c.b16 %v493, %v492
        %v504 = vpack.c.b16 %v495, %v494
        %v505 = vpack.c.b16 %v497, %v496
        %514 = vmatprep.subr.bf16.mxu0 0
        %515 = vmatpush1.bf16.msra.mxu0 %v505
        %516 = vmatprep.subr.bf16.mxu0 0
        %517 = vmatpush1.bf16.msra.mxu0 %v504
        %518 = vmatprep.subr.bf16.mxu0 0
        %519 = vmatpush1.bf16.msra.mxu0 %v503
        %520 = vmatprep.subr.bf16.mxu0 0
        %521 = vmatpush1.bf16.msra.mxu0 %v502
        %522 = vmatprep.subr.bf16.mxu0 0
        %523 = vmatpush1.bf16.msra.mxu0 %v501
        %524 = vmatprep.subr.bf16.mxu0 0
        %525 = vmatpush1.bf16.msra.mxu0 %v500
        %526 = vmatprep.subr.bf16.mxu0 0
        %527 = vmatpush1.bf16.msra.mxu0 %v499
        %528 = vmatprep.subr.bf16.mxu0 0
        %529 = vmatpush1.bf16.msra.mxu0 %v498
        %530 = vmatprep.subr.bf16.mxu0 0
        %531 = vmatpush2.bf16.msra.mxu0 0
        %532 = vmatprep.subr.bf16.mxu0 0
        %533 = vmatpush2.bf16.msra.mxu0 0
        %534 = vmatprep.subr.bf16.mxu0 0
        %535 = vmatpush2.bf16.msra.mxu0 0
        %536 = vmatprep.subr.bf16.mxu0 0
        %537 = vmatpush2.bf16.msra.mxu0 0
        %538 = vmatprep.subr.bf16.mxu0 0
        %539 = vmatpush2.bf16.msra.mxu0 0
        %540 = vmatprep.subr.bf16.mxu0 0
        %541 = vmatpush2.bf16.msra.mxu0 0
        %542 = vmatprep.subr.bf16.mxu0 0
        %543 = vmatpush2.bf16.msra.mxu0 0
        %544 = vmatprep.subr.bf16.mxu0 0
        %545 = vmatpush2.bf16.msra.mxu0 0
        %546 = vmatprep.mubr.bf16.mxu0 0
        %547 = vmatmul.mubr.bf16.gmra.mxu0 %v442
        %v548 = vpop.f32.mrf.mxu0
        %v549 = vadd.f32 %v464, %v548
        %v550 = vpop.f32.mrf.mxu0
        %v551 = vpop.f32.mrf.mxu0
        %v552 = vpop.f32.mrf.mxu0
        %553 = vdwg.mxu0
        %v554 = vadd.f32 %v549, %v324
        %v555 = vld [vmem:[%s5] sm:$0x1]
        %v556 = vld [vmem:[%s6] sm:$0x1]
        %v557 = vlaneseq
        %v558 = vand.u32 %v557, 127
        %vm559 = vcmp.lt.s32.totalorder %v558, 32
        %v560 = vsel %vm559, 1, 0
        %v561 = vcvt.s32.f32 %v560
        %v562 = vmul.f32 %v554, %v561
        %563 = vadd.xlane.f32.xlu0 %v562
        %v564 = vpop.xlane.xlu0 %563
        %v565 = vmul.f32 %v564, 0.03125
        %v566 = vsub.f32 %v562, %v565
        %v567 = vmul.f32 %v566, %v561
        %v568 = vmul.f32 %v567, %v567
        %569 = vadd.xlane.f32.xlu0 %v568
        %v570 = vpop.xlane.xlu0 %569
        %v571 = vmul.f32 %v570, 0.03125
        %v572 = vadd.f32 %v571, 1e-12
        %v573 = vrsqrt.pop %v572
        %v574 = vmul.f32 %v567, %v573
        %v576 = vlaneseq
        %v577 = vshrl.u32 %v576, 7
        %v578 = vsub.s32 0, %v577
        %v579 = vrot.slane %v555, %v578
        %v581 = vmul.f32 %v574, %v579
        %v583 = vlaneseq
        %v584 = vshrl.u32 %v583, 7
        %v585 = vsub.s32 0, %v584
        %v586 = vrot.slane %v556, %v585
        %v588 = vadd.f32 %v581, %v586
        %589 = vst [vmem:[%s322] sm:$0xff] %v588
        %s590 = sand.u32 %s185, 1
        %s591 = scalar_lea.sflag [#allocation4], %s590
        %s592 = sand.u32 %s185, 1
        %s593 = smul.addr %s592, 8
        %s594 = scalar_lea.vmem [#allocation8], %s593
        // Predicated region
        $region61: #{tpu_custom_call.1} parent=47 // pred_check
          %p595 = pneg %p195
        $region62: #{tpu_custom_call.1} parent=47 // pred_check_branch
          %597 = sbr.rel (%p595) target = $region64
        $region63: #{tpu_custom_call.1} parent=47 // pred_region
          %s599 = ssub.s32 128, 128
          %600 = vsyncadd %s591, %s599
          %s601 = smul.addr %s25, 128
          %s602 = scalar_lea.hbm %s7, %s601
          %s604 = sshll.u32 %s594, 4
          %s605 = int_to_ptr.vmem [resolvable:$true] %s604
          %607 = dma.vmem_to_hbm [thread:$0]  %s605, 128, %s602, %s591
        $region64: #{tpu_custom_call.1} parent=47 // pred_fallthru
          _
      $region48: #{tpu_custom_call.1} parent=5 // pred_fallthru
        _
      %p608 = scmp.le.s32.totalorder 2, %s20
      // Predicated region
      $region65: #{tpu_custom_call.1} parent=5 // pred_check
        %p609 = pneg %p608
      $region66: #{tpu_custom_call.1} parent=5 // pred_check_branch
        %611 = sbr.rel (%p609) target = $region68
      $region67: #{tpu_custom_call.1} parent=5 // pred_region
        %s612 = ssub.s32 %s20, 2
        // Predicated region
        $region69: #{tpu_custom_call.1} parent=67 // pred_check
          %p613 = pneg %p201
        $region70: #{tpu_custom_call.1} parent=67 // pred_check_branch
          %615 = sbr.rel (%p613) target = $region72
        $region71: #{tpu_custom_call.1} parent=67 // pred_region
          %s616 = sand.u32 %s186, 1
          %s617 = scalar_lea.sflag [#allocation4], %s616
          %s618 = sand.u32 %s186, 1
          %s619 = smul.addr %s618, 8
          %s620 = scalar_lea.vmem [#allocation8], %s619
          %621 = dma.done %s617, 128
        $region72: #{tpu_custom_call.1} parent=67 // pred_fallthru
          _
      $region68: #{tpu_custom_call.1} parent=5 // pred_fallthru
        _
    $region6: #{tpu_custom_call.1} parent=1 // loop_footer
      %s24 = sadd.s32 1, %s20
    $region7: #{tpu_custom_call.1} parent=1 // loop_footer_branch
      %19 = sbr.rel target = $region3
    $region8: #{tpu_custom_call.1} parent=1 // loop_exit
      _
    %622 = vsyncpa [#allocation3], 1
    %s623 = scalar_lea.sflag [#allocation3], 1
    %624 = vsyncpa %s623, 1
    %625 = vsyncpa [#allocation6], 1
    %626 = vsyncpa [#allocation4], 1
    %s627 = scalar_lea.sflag [#allocation4], 1
    %628 = vsyncpa %s627, 1

</llo_original>
